<compile_context>
chip_gen: v5e
topology: v5e:2x2
jax: 0.10.0
libtpu: 0.0.40
codegen_flags: <defaults>
</compile_context>

<pallas_src>
import functools

import jax
import jax.numpy as jnp
from jax.experimental import pallas as pl
from jax.experimental.pallas import tpu as pltpu


# ---------------------------------------------------------------------------
# Fused Pallas kernel: stem -> block -> head -> GAP -> classifier
# ---------------------------------------------------------------------------
def _fused_forward_kernel(
    patches_ref,                       # (1, TILE_HW, K_stem)  bf16
    stem_w_ref, bn1_s_ref, bn1_b_ref,  # (K_stem, C_STEM) bf16, (1, C_STEM) f32 x2
    blk_w_ref, blk_s_ref, blk_b_ref,   # (C_STEM, C_BLK) bf16, (1, C_BLK) f32 x2
    head_w_ref, bn2_s_ref, bn2_b_ref,  # (C_BLK, C_HEAD) bf16, (1, C_HEAD) f32 x2
    cls_w_ref, cls_b_ref,              # (C_HEAD, NCLS) bf16, (1, NCLS) f32
    logits_ref,                        # out: (1, 1, NCLS) f32
    pool_acc,                          # scratch: (1, C_HEAD) f32
    *, inv_hw,
):
    t = pl.program_id(1)

    @pl.when(t == 0)
    def _init():
        pool_acc[...] = jnp.zeros_like(pool_acc)

    x = patches_ref[0]                                     # (TILE_HW, K_stem) bf16

    # conv_stem (3x3 s2, via im2col patches) + bn1 + SiLU
    y = jnp.dot(x, stem_w_ref[...], preferred_element_type=jnp.float32)
    y = y * bn1_s_ref[...] + bn1_b_ref[...]
    y = y * jax.nn.sigmoid(y)

    # blocks: pointwise conv C_STEM -> C_BLK + BN + SiLU
    y = jnp.dot(y.astype(jnp.bfloat16), blk_w_ref[...],
                preferred_element_type=jnp.float32)
    y = y * blk_s_ref[...] + blk_b_ref[...]
    y = y * jax.nn.sigmoid(y)

    # conv_head: 1x1 conv C_BLK -> C_HEAD + bn2 + SiLU
    y = jnp.dot(y.astype(jnp.bfloat16), head_w_ref[...],
                preferred_element_type=jnp.float32)
    y = y * bn2_s_ref[...] + bn2_b_ref[...]
    y = y * jax.nn.sigmoid(y)                              # (TILE_HW, C_HEAD) f32

    # global average pool: accumulate per-sample partial sums across spatial tiles
    pool_acc[...] += jnp.sum(y, axis=0, keepdims=True)

    @pl.when(t == pl.num_programs(1) - 1)
    def _finalize():
        pooled = pool_acc[...] * inv_hw                    # (1, C_HEAD) f32
        logits = jnp.dot(pooled.astype(jnp.bfloat16), cls_w_ref[...],
                         preferred_element_type=jnp.float32) + cls_b_ref[...]
        logits_ref[...] = logits[None].astype(logits_ref.dtype)


def _pick_spatial_tile(hw, max_tile=512):
    """Largest multiple-of-8 divisor of hw up to max_tile (keeps (8,128) rule + VMEM bound)."""
    for t in (512, 256, 128, 64, 32, 16, 8):
        if t <= max_tile and hw % t == 0:
            return t
    return hw  # full extent (always legal: block dim equals array dim)


def fused_forward(patches, params):
    """patches: (N, HW, K_stem) bf16  ->  logits (N, num_classes) f32."""
    N, HW, K = patches.shape
    C_STEM = params["stem_w"].shape[1]
    C_BLK = params["blk_w"].shape[1]
    C_HEAD = params["head_w"].shape[1]
    NCLS = params["cls_w"].shape[1]

    tile = _pick_spatial_tile(HW)
    grid = (N, HW // tile)

    def resident(shape):
        # untiled weight / affine param: same full block at every grid point
        return pl.BlockSpec(shape, lambda n, t, _s=len(shape): (0,) * _s)

    kernel = functools.partial(_fused_forward_kernel, inv_hw=1.0 / float(HW))

    out = pl.pallas_call(
        kernel,
        out_shape=jax.ShapeDtypeStruct((N, 1, NCLS), jnp.float32),
        grid=grid,
        in_specs=[
            pl.BlockSpec((1, tile, K), lambda n, t: (n, t, 0)),
            resident((K, C_STEM)), resident((1, C_STEM)), resident((1, C_STEM)),
            resident((C_STEM, C_BLK)), resident((1, C_BLK)), resident((1, C_BLK)),
            resident((C_BLK, C_HEAD)), resident((1, C_HEAD)), resident((1, C_HEAD)),
            resident((C_HEAD, NCLS)), resident((1, NCLS)),
        ],
        out_specs=pl.BlockSpec((1, 1, NCLS), lambda n, t: (n, 0, 0)),
        scratch_shapes=[pltpu.VMEM((1, C_HEAD), jnp.float32)],
        compiler_params=pltpu.CompilerParams(
            dimension_semantics=("parallel", "arbitrary"),
            vmem_limit_bytes=64 * 1024 * 1024,
        ),
    )(
        patches,
        params["stem_w"], params["bn1_scale"], params["bn1_shift"],
        params["blk_w"], params["blk_scale"], params["blk_shift"],
        params["head_w"], params["bn2_scale"], params["bn2_shift"],
        params["cls_w"], params["cls_b"],
    )
    return out.reshape(N, NCLS)


# ---------------------------------------------------------------------------
# Glue (plain JAX): im2col, parameter construction, module orchestration
# ---------------------------------------------------------------------------
def im2col(x_nhwc, kh, kw, stride, pad):
    """Extract conv patches; returns (N, OH*OW, kh*kw*C) with (kh, kw, cin) ordering."""
    N, H, W, C = x_nhwc.shape
    xp = jnp.pad(x_nhwc, ((0, 0), (pad, pad), (pad, pad), (0, 0)))
    OH = (H + 2 * pad - kh) // stride + 1
    OW = (W + 2 * pad - kw) // stride + 1
    cols = []
    for i in range(kh):
        for j in range(kw):
            cols.append(xp[:, i:i + stride * OH:stride, j:j + stride * OW:stride, :])
    patches = jnp.stack(cols, axis=3)                  # (N, OH, OW, kh*kw, C)
    return patches.reshape(N, OH * OW, kh * kw * C), OH, OW


def _bn_fold(gamma, beta, mean, var, eps=1e-5):
    scale = gamma / jnp.sqrt(var + eps)
    shift = beta - mean * scale
    return scale, shift


def make_params(num_input_channels=4, num_classes=10):
    """Deterministic synthetic parameters; replicates CustomEfficientNet stem surgery."""
    key = jax.random.PRNGKey(0)
    ks = jax.random.split(key, 16)

    C_STEM, C_BLK, C_HEAD = 32, 64, 128

    # "original" pretrained stem weight: (Cout=32, Cin=3, KH=3, KW=3), no bias
    w_orig = jax.random.normal(ks[0], (C_STEM, 3, 3, 3), jnp.float32) * 0.1
    # _initialize_weights: copy first 3 input channels, replicate channel 0 for extras
    w_new = jnp.zeros((C_STEM, num_input_channels, 3, 3), jnp.float32)
    w_new = w_new.at[:, :3].set(w_orig[:, :3])
    for i in range(num_input_channels - 3):
        w_new = w_new.at[:, 3 + i].set(w_orig[:, 0])
    # (Cout, Cin, KH, KW) -> (KH, KW, Cin, Cout) -> (KH*KW*Cin, Cout)  [matches im2col order]
    stem_w = jnp.transpose(w_new, (2, 3, 1, 0)).reshape(3 * 3 * num_input_channels, C_STEM)

    def bn(k, c):
        k1, k2, k3, k4 = jax.random.split(k, 4)
        gamma = 1.0 + 0.1 * jax.random.normal(k1, (c,), jnp.float32)
        beta = 0.1 * jax.random.normal(k2, (c,), jnp.float32)
        mean = 0.1 * jax.random.normal(k3, (c,), jnp.float32)
        var = jnp.abs(jax.random.normal(k4, (c,), jnp.float32)) + 0.5
        s, b = _bn_fold(gamma, beta, mean, var)
        return s.reshape(1, c).astype(jnp.float32), b.reshape(1, c).astype(jnp.float32)

    bn1_scale, bn1_shift = bn(ks[1], C_STEM)

    blk_w = jax.random.normal(ks[2], (C_STEM, C_BLK), jnp.float32) * 0.1
    blk_scale, blk_shift = bn(ks[3], C_BLK)

    head_w = jax.random.normal(ks[4], (C_BLK, C_HEAD), jnp.float32) * 0.1
    bn2_scale, bn2_shift = bn(ks[5], C_HEAD)

    cls_w = jax.random.normal(ks[6], (C_HEAD, num_classes), jnp.float32) * 0.1  # (in, out)
    cls_b = 0.1 * jax.random.normal(ks[7], (num_classes,), jnp.float32)

    # Matmul operands in bf16 (MXU fast path); affine params / bias stay f32.
    return dict(
        stem_w=stem_w.astype(jnp.bfloat16),
        bn1_scale=bn1_scale, bn1_shift=bn1_shift,
        blk_w=blk_w.astype(jnp.bfloat16),
        blk_scale=blk_scale, blk_shift=blk_shift,
        head_w=head_w.astype(jnp.bfloat16),
        bn2_scale=bn2_scale, bn2_shift=bn2_shift,
        cls_w=cls_w.astype(jnp.bfloat16),
        cls_b=cls_b.reshape(1, num_classes).astype(jnp.float32),
    )


def custom_efficientnet_forward(x_nchw, params):
    # All channel/class dims are derived from (static) parameter shapes inside fused_forward,
    # so nothing shape-determining is traced under jit.
    x = jnp.transpose(x_nchw, (0, 2, 3, 1)).astype(jnp.float32)   # NCHW -> NHWC
    patches, _, _ = im2col(x, 3, 3, 2, 1)                         # conv_stem is 3x3 s2 p1
    patches = patches.astype(jnp.bfloat16)
    return fused_forward(patches, params)


if __name__ == "__main__":
    num_input_channels = 4
    params = make_params(num_input_channels=num_input_channels, num_classes=10)

    x = jax.random.normal(jax.random.PRNGKey(0), (2, num_input_channels, 16, 16), jnp.float32)

    out = jax.jit(custom_efficientnet_forward)(x, params)
    out = jax.block_until_ready(out)
    assert out.shape == (2, 10), out.shape
    assert jnp.all(jnp.isfinite(out))
    print("KERNEL_OK")
</pallas_src>

<mosaic_0001>
module attributes {stable_mosaic.version = 11 : i64} {
  func.func @_fused_forward_kernel(%arg0: i32, %arg1: i32, %arg2: memref<1x64x36xbf16, #tpu.memory_space<vmem>>, %arg3: memref<36x32xbf16, #tpu.memory_space<vmem>>, %arg4: memref<1x32xf32, #tpu.memory_space<vmem>>, %arg5: memref<1x32xf32, #tpu.memory_space<vmem>>, %arg6: memref<32x64xbf16, #tpu.memory_space<vmem>>, %arg7: memref<1x64xf32, #tpu.memory_space<vmem>>, %arg8: memref<1x64xf32, #tpu.memory_space<vmem>>, %arg9: memref<64x128xbf16, #tpu.memory_space<vmem>>, %arg10: memref<1x128xf32, #tpu.memory_space<vmem>>, %arg11: memref<1x128xf32, #tpu.memory_space<vmem>>, %arg12: memref<128x10xbf16, #tpu.memory_space<vmem>>, %arg13: memref<1x10xf32, #tpu.memory_space<vmem>>, %arg14: memref<1x1x10xf32, #tpu.memory_space<vmem>>, %arg15: memref<1x128xf32, #tpu.memory_space<vmem>>) attributes {dimension_semantics = [#tpu.dimension_semantics<parallel>, #tpu.dimension_semantics<arbitrary>], iteration_bounds = array<i64: 2, 1>, scalar_prefetch = 0 : i64, scratch_operands = 1 : i64, tpu.core_type = #tpu.core_type<tc>, window_params = [{transform_indices = @transform_0, window_bounds = array<i64: 1, 64, 36>}, {pipeline_mode = #tpu.pipeline_mode<synchronous>, transform_indices = @transform_1, window_bounds = array<i64: 36, 32>}, {pipeline_mode = #tpu.pipeline_mode<synchronous>, transform_indices = @transform_2, window_bounds = array<i64: 1, 32>}, {pipeline_mode = #tpu.pipeline_mode<synchronous>, transform_indices = @transform_3, window_bounds = array<i64: 1, 32>}, {pipeline_mode = #tpu.pipeline_mode<synchronous>, transform_indices = @transform_4, window_bounds = array<i64: 32, 64>}, {pipeline_mode = #tpu.pipeline_mode<synchronous>, transform_indices = @transform_5, window_bounds = array<i64: 1, 64>}, {pipeline_mode = #tpu.pipeline_mode<synchronous>, transform_indices = @transform_6, window_bounds = array<i64: 1, 64>}, {pipeline_mode = #tpu.pipeline_mode<synchronous>, transform_indices = @transform_7, window_bounds = array<i64: 64, 128>}, {pipeline_mode = #tpu.pipeline_mode<synchronous>, transform_indices = @transform_8, window_bounds = array<i64: 1, 128>}, {pipeline_mode = #tpu.pipeline_mode<synchronous>, transform_indices = @transform_9, window_bounds = array<i64: 1, 128>}, {pipeline_mode = #tpu.pipeline_mode<synchronous>, transform_indices = @transform_10, window_bounds = array<i64: 128, 10>}, {pipeline_mode = #tpu.pipeline_mode<synchronous>, transform_indices = @transform_11, window_bounds = array<i64: 1, 10>}, {transform_indices = @transform_12, window_bounds = array<i64: 1, 1, 10>}]} {
    %c0_i32 = arith.constant 0 : i32
    %0 = arith.cmpi eq, %arg1, %c0_i32 : i32
    %1 = arith.extui %0 : i1 to i32
    %c0_i32_0 = arith.constant 0 : i32
    %2 = arith.cmpi ne, %1, %c0_i32_0 : i32
    scf.if %2 {
      %cst_33 = arith.constant 0.000000e+00 : f32
      %57 = vector.broadcast %cst_33 : f32 to vector<1x128xf32>
      %c0_34 = arith.constant 0 : index
      %c0_35 = arith.constant 0 : index
      %58 = vector.load %arg15[%c0_34, %c0_35] : memref<1x128xf32, #tpu.memory_space<vmem>>, vector<1x128xf32>
      tpu.vector_store %arg15[%c0_34, %c0_35], %57 {strides = array<i32>} : memref<1x128xf32, #tpu.memory_space<vmem>>, vector<1x128xf32>,
    } else {
    }
    %c0 = arith.constant 0 : index
    %c0_1 = arith.constant 0 : index
    %c0_2 = arith.constant 0 : index
    %3 = vector.load %arg2[%c0, %c0_1, %c0_2] : memref<1x64x36xbf16, #tpu.memory_space<vmem>>, vector<1x64x36xbf16>
    %4 = vector.shape_cast %3 : vector<1x64x36xbf16> to vector<64x36xbf16>
    %c0_3 = arith.constant 0 : index
    %c0_4 = arith.constant 0 : index
    %5 = vector.load %arg3[%c0_3, %c0_4] : memref<36x32xbf16, #tpu.memory_space<vmem>>, vector<36x32xbf16>
    %cst = arith.constant dense<0.000000e+00> : vector<64x32xf32>
    %6 = tpu.matmul %4, %5, %cst {dimension_numbers = #tpu.dot_dimension_numbers<[1], [0], [0], [1], [0, 0, 1, 1], [], []>} : vector<64x36xbf16>, vector<36x32xbf16>, vector<64x32xf32> -> vector<64x32xf32>
    %c0_5 = arith.constant 0 : index
    %c0_6 = arith.constant 0 : index
    %7 = vector.load %arg4[%c0_5, %c0_6] : memref<1x32xf32, #tpu.memory_space<vmem>>, vector<1x32xf32>
    %8 = vector.broadcast %7 : vector<1x32xf32> to vector<64x32xf32>
    %9 = arith.mulf %6, %8 : vector<64x32xf32>
    %c0_7 = arith.constant 0 : index
    %c0_8 = arith.constant 0 : index
    %10 = vector.load %arg5[%c0_7, %c0_8] : memref<1x32xf32, #tpu.memory_space<vmem>>, vector<1x32xf32>
    %11 = vector.broadcast %10 : vector<1x32xf32> to vector<64x32xf32>
    %12 = arith.addf %9, %11 : vector<64x32xf32>
    %13 = arith.negf %12 : vector<64x32xf32>
    %14 = math.exp %13 : vector<64x32xf32>
    %cst_9 = arith.constant 1.000000e+00 : f32
    %15 = vector.broadcast %cst_9 : f32 to vector<64x32xf32>
    %16 = arith.addf %15, %14 : vector<64x32xf32>
    %17 = arith.divf %15, %16 : vector<64x32xf32>
    %18 = arith.mulf %12, %17 : vector<64x32xf32>
    %19 = arith.truncf %18 : vector<64x32xf32> to vector<64x32xbf16>
    %c0_10 = arith.constant 0 : index
    %c0_11 = arith.constant 0 : index
    %20 = vector.load %arg6[%c0_10, %c0_11] : memref<32x64xbf16, #tpu.memory_space<vmem>>, vector<32x64xbf16>
    %cst_12 = arith.constant dense<0.000000e+00> : vector<64x64xf32>
    %21 = tpu.matmul %19, %20, %cst_12 {dimension_numbers = #tpu.dot_dimension_numbers<[1], [0], [0], [1], [0, 0, 1, 1], [], []>} : vector<64x32xbf16>, vector<32x64xbf16>, vector<64x64xf32> -> vector<64x64xf32>
    %c0_13 = arith.constant 0 : index
    %c0_14 = arith.constant 0 : index
    %22 = vector.load %arg7[%c0_13, %c0_14] : memref<1x64xf32, #tpu.memory_space<vmem>>, vector<1x64xf32>
    %23 = vector.broadcast %22 : vector<1x64xf32> to vector<64x64xf32>
    %24 = arith.mulf %21, %23 : vector<64x64xf32>
    %c0_15 = arith.constant 0 : index
    %c0_16 = arith.constant 0 : index
    %25 = vector.load %arg8[%c0_15, %c0_16] : memref<1x64xf32, #tpu.memory_space<vmem>>, vector<1x64xf32>
    %26 = vector.broadcast %25 : vector<1x64xf32> to vector<64x64xf32>
    %27 = arith.addf %24, %26 : vector<64x64xf32>
    %28 = arith.negf %27 : vector<64x64xf32>
    %29 = math.exp %28 : vector<64x64xf32>
    %cst_17 = arith.constant 1.000000e+00 : f32
    %30 = vector.broadcast %cst_17 : f32 to vector<64x64xf32>
    %31 = arith.addf %30, %29 : vector<64x64xf32>
    %32 = arith.divf %30, %31 : vector<64x64xf32>
    %33 = arith.mulf %27, %32 : vector<64x64xf32>
    %34 = arith.truncf %33 : vector<64x64xf32> to vector<64x64xbf16>
    %c0_18 = arith.constant 0 : index
    %c0_19 = arith.constant 0 : index
    %35 = vector.load %arg9[%c0_18, %c0_19] : memref<64x128xbf16, #tpu.memory_space<vmem>>, vector<64x128xbf16>
    %cst_20 = arith.constant dense<0.000000e+00> : vector<64x128xf32>
    %36 = tpu.matmul %34, %35, %cst_20 {dimension_numbers = #tpu.dot_dimension_numbers<[1], [0], [0], [1], [0, 0, 1, 1], [], []>} : vector<64x64xbf16>, vector<64x128xbf16>, vector<64x128xf32> -> vector<64x128xf32>
    %c0_21 = arith.constant 0 : index
    %c0_22 = arith.constant 0 : index
    %37 = vector.load %arg10[%c0_21, %c0_22] : memref<1x128xf32, #tpu.memory_space<vmem>>, vector<1x128xf32>
    %38 = vector.broadcast %37 : vector<1x128xf32> to vector<64x128xf32>
    %39 = arith.mulf %36, %38 : vector<64x128xf32>
    %c0_23 = arith.constant 0 : index
    %c0_24 = arith.constant 0 : index
    %40 = vector.load %arg11[%c0_23, %c0_24] : memref<1x128xf32, #tpu.memory_space<vmem>>, vector<1x128xf32>
    %41 = vector.broadcast %40 : vector<1x128xf32> to vector<64x128xf32>
    %42 = arith.addf %39, %41 : vector<64x128xf32>
    %43 = arith.negf %42 : vector<64x128xf32>
    %44 = math.exp %43 : vector<64x128xf32>
    %cst_25 = arith.constant 1.000000e+00 : f32
    %45 = vector.broadcast %cst_25 : f32 to vector<64x128xf32>
    %46 = arith.addf %45, %44 : vector<64x128xf32>
    %47 = arith.divf %45, %46 : vector<64x128xf32>
    %48 = arith.mulf %42, %47 : vector<64x128xf32>
    %c0_26 = arith.constant 0 : index
    %c0_27 = arith.constant 0 : index
    %49 = vector.load %arg15[%c0_26, %c0_27] : memref<1x128xf32, #tpu.memory_space<vmem>>, vector<1x128xf32>
    %cst_28 = arith.constant dense<0.000000e+00> : vector<128xf32>
    %50 = vector.multi_reduction <add>, %48, %cst_28 [0] : vector<64x128xf32> to vector<128xf32>
    %51 = vector.shape_cast %50 : vector<128xf32> to vector<1x128xf32>
    %52 = arith.addf %49, %51 : vector<1x128xf32>
    %c0_29 = arith.constant 0 : index
    %c0_30 = arith.constant 0 : index
    %53 = vector.load %arg15[%c0_29, %c0_30] : memref<1x128xf32, #tpu.memory_space<vmem>>, vector<1x128xf32>
    tpu.vector_store %arg15[%c0_29, %c0_30], %52 {strides = array<i32>} : memref<1x128xf32, #tpu.memory_space<vmem>>, vector<1x128xf32>,
    %c0_i32_31 = arith.constant 0 : i32
    %54 = arith.cmpi eq, %arg1, %c0_i32_31 : i32
    %55 = arith.extui %54 : i1 to i32
    %c0_i32_32 = arith.constant 0 : i32
    %56 = arith.cmpi ne, %55, %c0_i32_32 : i32
    scf.if %56 {
      %c0_33 = arith.constant 0 : index
      %c0_34 = arith.constant 0 : index
      %57 = vector.load %arg15[%c0_33, %c0_34] : memref<1x128xf32, #tpu.memory_space<vmem>>, vector<1x128xf32>
      %cst_35 = arith.constant 1.562500e-02 : f32
      %58 = vector.broadcast %cst_35 : f32 to vector<1x128xf32>
      %59 = arith.mulf %57, %58 : vector<1x128xf32>
      %60 = arith.truncf %59 : vector<1x128xf32> to vector<1x128xbf16>
      %c0_36 = arith.constant 0 : index
      %c0_37 = arith.constant 0 : index
      %61 = vector.load %arg12[%c0_36, %c0_37] : memref<128x10xbf16, #tpu.memory_space<vmem>>, vector<128x10xbf16>
      %cst_38 = arith.constant dense<0.000000e+00> : vector<1x10xf32>
      %62 = tpu.matmul %60, %61, %cst_38 {dimension_numbers = #tpu.dot_dimension_numbers<[1], [0], [0], [1], [0, 0, 1, 1], [], []>} : vector<1x128xbf16>, vector<128x10xbf16>, vector<1x10xf32> -> vector<1x10xf32>
      %c0_39 = arith.constant 0 : index
      %c0_40 = arith.constant 0 : index
      %63 = vector.load %arg13[%c0_39, %c0_40] : memref<1x10xf32, #tpu.memory_space<vmem>>, vector<1x10xf32>
      %64 = arith.addf %62, %63 : vector<1x10xf32>
      %65 = vector.shape_cast %64 : vector<1x10xf32> to vector<1x1x10xf32>
      %c0_41 = arith.constant 0 : index
      %c0_42 = arith.constant 0 : index
      %c0_43 = arith.constant 0 : index
      %66 = vector.load %arg14[%c0_41, %c0_42, %c0_43] : memref<1x1x10xf32, #tpu.memory_space<vmem>>, vector<1x1x10xf32>
      tpu.vector_store %arg14[%c0_41, %c0_42, %c0_43], %65 {strides = array<i32>} : memref<1x1x10xf32, #tpu.memory_space<vmem>>, vector<1x1x10xf32>,
    } else {
    }
    return
  }
  func.func @transform_0(%arg0: i32, %arg1: i32) -> (i32, i32, i32) {
    %c0_i32 = arith.constant 0 : i32
    %c0_i32_0 = arith.constant 0 : i32
    return %arg0, %arg1, %c0_i32 : i32, i32, i32
  }
  func.func @transform_1(%arg0: i32, %arg1: i32) -> (i32, i32) {
    %c0_i32 = arith.constant 0 : i32
    %c0_i32_0 = arith.constant 0 : i32
    %c0_i32_1 = arith.constant 0 : i32
    return %c0_i32, %c0_i32_0 : i32, i32
  }
  func.func @transform_2(%arg0: i32, %arg1: i32) -> (i32, i32) {
    %c0_i32 = arith.constant 0 : i32
    %c0_i32_0 = arith.constant 0 : i32
    %c0_i32_1 = arith.constant 0 : i32
    return %c0_i32, %c0_i32_0 : i32, i32
  }
  func.func @transform_3(%arg0: i32, %arg1: i32) -> (i32, i32) {
    %c0_i32 = arith.constant 0 : i32
    %c0_i32_0 = arith.constant 0 : i32
    %c0_i32_1 = arith.constant 0 : i32
    return %c0_i32, %c0_i32_0 : i32, i32
  }
  func.func @transform_4(%arg0: i32, %arg1: i32) -> (i32, i32) {
    %c0_i32 = arith.constant 0 : i32
    %c0_i32_0 = arith.constant 0 : i32
    %c0_i32_1 = arith.constant 0 : i32
    return %c0_i32, %c0_i32_0 : i32, i32
  }
  func.func @transform_5(%arg0: i32, %arg1: i32) -> (i32, i32) {
    %c0_i32 = arith.constant 0 : i32
    %c0_i32_0 = arith.constant 0 : i32
    %c0_i32_1 = arith.constant 0 : i32
    return %c0_i32, %c0_i32_0 : i32, i32
  }
  func.func @transform_6(%arg0: i32, %arg1: i32) -> (i32, i32) {
    %c0_i32 = arith.constant 0 : i32
    %c0_i32_0 = arith.constant 0 : i32
    %c0_i32_1 = arith.constant 0 : i32
    return %c0_i32, %c0_i32_0 : i32, i32
  }
  func.func @transform_7(%arg0: i32, %arg1: i32) -> (i32, i32) {
    %c0_i32 = arith.constant 0 : i32
    %c0_i32_0 = arith.constant 0 : i32
    %c0_i32_1 = arith.constant 0 : i32
    return %c0_i32, %c0_i32_0 : i32, i32
  }
  func.func @transform_8(%arg0: i32, %arg1: i32) -> (i32, i32) {
    %c0_i32 = arith.constant 0 : i32
    %c0_i32_0 = arith.constant 0 : i32
    %c0_i32_1 = arith.constant 0 : i32
    return %c0_i32, %c0_i32_0 : i32, i32
  }
  func.func @transform_9(%arg0: i32, %arg1: i32) -> (i32, i32) {
    %c0_i32 = arith.constant 0 : i32
    %c0_i32_0 = arith.constant 0 : i32
    %c0_i32_1 = arith.constant 0 : i32
    return %c0_i32, %c0_i32_0 : i32, i32
  }
  func.func @transform_10(%arg0: i32, %arg1: i32) -> (i32, i32) {
    %c0_i32 = arith.constant 0 : i32
    %c0_i32_0 = arith.constant 0 : i32
    %c0_i32_1 = arith.constant 0 : i32
    return %c0_i32, %c0_i32_0 : i32, i32
  }
  func.func @transform_11(%arg0: i32, %arg1: i32) -> (i32, i32) {
    %c0_i32 = arith.constant 0 : i32
    %c0_i32_0 = arith.constant 0 : i32
    %c0_i32_1 = arith.constant 0 : i32
    return %c0_i32, %c0_i32_0 : i32, i32
  }
  func.func @transform_12(%arg0: i32, %arg1: i32) -> (i32, i32, i32) {
    %c0_i32 = arith.constant 0 : i32
    %c0_i32_0 = arith.constant 0 : i32
    %c0_i32_1 = arith.constant 0 : i32
    return %arg0, %c0_i32, %c0_i32_0 : i32, i32, i32
  }
}

</mosaic_0001>

<llo_original>
// kernel: custom_efficientnet_forward.1
$region0: #{custom_efficientnet_forward.1}
  #allocation0 [shape = 'u32[]', space=smem, size = 0x4, offset = 0x4, fixed_abs, tag = 'smem constant byte address 0x4 - core index']
  #allocation1 [shape = 'u32[72,128]{1,0:T(1,128)}', space=vmem, size = 0x9000, scoped, tag = 'internal scratch']
  #allocation2 [shape = 'f32[1,128]{1,0:T(1,128)}', space=vmem, size = 0x200, scoped, tag = 'scratch operand']
  %s0 = inlined_call_operand.vmem [shape: bf16[2,64,36], index: 0, kind: input, shape index: {}]
  %s1 = inlined_call_operand.vmem [shape: bf16[36,32], index: 1, kind: input, shape index: {}]
  %s2 = inlined_call_operand.vmem [shape: f32[1,32], index: 2, kind: input, shape index: {}]
  %s3 = inlined_call_operand.vmem [shape: f32[1,32], index: 3, kind: input, shape index: {}]
  %s4 = inlined_call_operand.vmem [shape: bf16[32,64], index: 4, kind: input, shape index: {}]
  %s5 = inlined_call_operand.vmem [shape: f32[1,64], index: 5, kind: input, shape index: {}]
  %s6 = inlined_call_operand.vmem [shape: f32[1,64], index: 6, kind: input, shape index: {}]
  %s7 = inlined_call_operand.vmem [shape: bf16[64,128], index: 7, kind: input, shape index: {}]
  %s8 = inlined_call_operand.vmem [shape: f32[1,128], index: 8, kind: input, shape index: {}]
  %s9 = inlined_call_operand.vmem [shape: f32[1,128], index: 9, kind: input, shape index: {}]
  %s10 = inlined_call_operand.vmem [shape: bf16[128,10], index: 10, kind: input, shape index: {}]
  %s11 = inlined_call_operand.vmem [shape: f32[1,10], index: 11, kind: input, shape index: {}]
  %s12 = inlined_call_operand.hbm [shape: f32[2,1,10], index: 12, kind: output, shape index: {}]
  %s13 = sld [smem:[#allocation0]]
  $region89: #{custom_efficientnet_forward.1} parent=0
    _
  %s15 = ssub.s32 1, %s13
  %s16 = scalar_select 0, %s15, %s13
  $region1: #{custom_efficientnet_forward.1} parent=0
    #allocation3 [shape = 'u8[1024]{0}', space=vmem, size = 0x400, scoped, tag = 'output window, operand 0']
    #allocation4 [shape = 's32[2]{0}', space=sflag, size = 0x8, scoped, tag = 'scoped memory for custom_efficientnet_forward.1']
    %17 = vsyncpa [#allocation4], 0
    %s18 = scalar_lea.sflag [#allocation4], 1
    %19 = vsyncpa %s18, 0
    loop: start=0, step=1, limit=4
    $region2: #{custom_efficientnet_forward.1} parent=1 // loop_pre_header
      _
    $region3: #{custom_efficientnet_forward.1} parent=1 // loop_header
      %s21 = sphi 0, %s25
      %p22 = scmp.ge.s32.totalorder %s21, 4
      %s28 = sphi 0, %s40
      %s29 = sphi 0, %s36
      %s30 = sphi 0, %s28
      %s31 = sphi 0, %s29
      %s32 = sphi 0, %s30
      %s33 = sphi 0, %s31
      %s45 = sphi 0, %s47
      %s48 = sphi 0, %s45
      %s49 = sphi 0, %s48
      %s65 = sphi 0, %s49
      %s69 = sphi 0, %s69
      %s71 = sphi 0, %s69
      %s72 = sphi 0, %s71
      %s86 = sphi 0, %s72
      %s90 = sphi 0, %s90
      %s92 = sphi 0, %s90
      %s93 = sphi 0, %s92
      %s107 = sphi 0, %s93
      %s111 = sphi 0, %s111
      %s113 = sphi 0, %s111
      %s114 = sphi 0, %s113
      %s128 = sphi 0, %s114
      %s132 = sphi 0, %s132
      %s134 = sphi 0, %s132
      %s135 = sphi 0, %s134
      %s149 = sphi 0, %s135
      %s153 = sphi 0, %s153
      %s155 = sphi 0, %s153
      %s156 = sphi 0, %s155
      %s170 = sphi 0, %s156
      %s174 = sphi 0, %s174
      %s176 = sphi 0, %s174
      %s177 = sphi 0, %s176
      %s191 = sphi 0, %s177
      %s195 = sphi 0, %s195
      %s197 = sphi 0, %s195
      %s198 = sphi 0, %s197
      %s212 = sphi 0, %s198
      %s216 = sphi 0, %s216
      %s218 = sphi 0, %s216
      %s219 = sphi 0, %s218
      %s233 = sphi 0, %s219
      %s237 = sphi 0, %s237
      %s239 = sphi 0, %s237
      %s240 = sphi 0, %s239
      %s254 = sphi 0, %s240
      %s258 = sphi 0, %s258
      %s260 = sphi 0, %s258
      %s261 = sphi 0, %s260
      %s275 = sphi 0, %s261
      %s279 = sphi 0, %s279
      %s281 = sphi 0, %s279
      %s282 = sphi 0, %s281
      %s296 = sphi 0, %s282
      %s302 = sphi 0, %s304
      %s305 = sphi 0, %s302
      %s306 = sphi 0, %s305
      %s322 = sphi 0, %s306
    $region4: #{custom_efficientnet_forward.1} parent=1 // loop_header_branch
      %24 = sbr.rel (%p22) target = $region8
    $region5: #{custom_efficientnet_forward.1} parent=1 // loop_body
      %s26 = ssub.s32 %s21, 1
      %s27 = ssub.s32 %s21, 2
      %s34 = sadd.s32 1, %s29
      %p35 = scmp.ge.s32.totalorder %s34, 1
      %s36 = scalar_select %p35, 0, %s34
      %s37 = sadd.s32 1, %s28
      %s38 = scalar_select %p35, %s37, %s28
      %p39 = scmp.ge.s32.totalorder %s38, 2
      %s40 = scalar_select %p39, 0, %s38
      %s41 = ssub.s32 %s28, %s40
      %s42 = ssub.s32 %s29, %s36
      %s43 = sor.u32 %s41, %s42
      %p44 = scmp.eq.s32.totalorder %s43, 0
      %s46 = sadd.s32 %s45, 1
      %s47 = scalar_select %p44, %s45, %s46
      %p50 = pneg %p44
      %p51 = scmp.eq.s32.totalorder %s21, 1
      %p52 = por %p50, %p51
      %p53 = scmp.ne.s32.totalorder %s45, %s48
      %p54 = scmp.eq.s32.totalorder %s21, 0
      %p55 = por %p53, %p54
      %p56 = scmp.ne.s32.totalorder %s45, %s48
      %p57 = scmp.eq.s32.totalorder %s26, 1
      %p58 = por %p56, %p57
      %p59 = scmp.ne.s32.totalorder %s48, %s49
      %p60 = scmp.eq.s32.totalorder %s26, 0
      %p61 = por %p59, %p60
      %p62 = scmp.ne.s32.totalorder %s48, %s49
      %p63 = scmp.eq.s32.totalorder %s27, 1
      %p64 = por %p62, %p63
      %p66 = scmp.ne.s32.totalorder %s49, %s65
      %p67 = scmp.eq.s32.totalorder %s27, 0
      %p68 = por %p66, %p67
      %s70 = sadd.s32 %s69, 1
      %p73 = scmp.eq.s32.totalorder %s21, 1
      %p74 = scmp.ne.s32.totalorder %s69, %s71
      %p75 = scmp.eq.s32.totalorder %s21, 0
      %p76 = por %p74, %p75
      %p77 = scmp.ne.s32.totalorder %s69, %s71
      %p78 = scmp.eq.s32.totalorder %s26, 1
      %p79 = por %p77, %p78
      %p80 = scmp.ne.s32.totalorder %s71, %s72
      %p81 = scmp.eq.s32.totalorder %s26, 0
      %p82 = por %p80, %p81
      %p83 = scmp.ne.s32.totalorder %s71, %s72
      %p84 = scmp.eq.s32.totalorder %s27, 1
      %p85 = por %p83, %p84
      %p87 = scmp.ne.s32.totalorder %s72, %s86
      %p88 = scmp.eq.s32.totalorder %s27, 0
      %p89 = por %p87, %p88
      %s91 = sadd.s32 %s90, 1
      %p94 = scmp.eq.s32.totalorder %s21, 1
      %p95 = scmp.ne.s32.totalorder %s90, %s92
      %p96 = scmp.eq.s32.totalorder %s21, 0
      %p97 = por %p95, %p96
      %p98 = scmp.ne.s32.totalorder %s90, %s92
      %p99 = scmp.eq.s32.totalorder %s26, 1
      %p100 = por %p98, %p99
      %p101 = scmp.ne.s32.totalorder %s92, %s93
      %p102 = scmp.eq.s32.totalorder %s26, 0
      %p103 = por %p101, %p102
      %p104 = scmp.ne.s32.totalorder %s92, %s93
      %p105 = scmp.eq.s32.totalorder %s27, 1
      %p106 = por %p104, %p105
      %p108 = scmp.ne.s32.totalorder %s93, %s107
      %p109 = scmp.eq.s32.totalorder %s27, 0
      %p110 = por %p108, %p109
      %s112 = sadd.s32 %s111, 1
      %p115 = scmp.eq.s32.totalorder %s21, 1
      %p116 = scmp.ne.s32.totalorder %s111, %s113
      %p117 = scmp.eq.s32.totalorder %s21, 0
      %p118 = por %p116, %p117
      %p119 = scmp.ne.s32.totalorder %s111, %s113
      %p120 = scmp.eq.s32.totalorder %s26, 1
      %p121 = por %p119, %p120
      %p122 = scmp.ne.s32.totalorder %s113, %s114
      %p123 = scmp.eq.s32.totalorder %s26, 0
      %p124 = por %p122, %p123
      %p125 = scmp.ne.s32.totalorder %s113, %s114
      %p126 = scmp.eq.s32.totalorder %s27, 1
      %p127 = por %p125, %p126
      %p129 = scmp.ne.s32.totalorder %s114, %s128
      %p130 = scmp.eq.s32.totalorder %s27, 0
      %p131 = por %p129, %p130
      %s133 = sadd.s32 %s132, 1
      %p136 = scmp.eq.s32.totalorder %s21, 1
      %p137 = scmp.ne.s32.totalorder %s132, %s134
      %p138 = scmp.eq.s32.totalorder %s21, 0
      %p139 = por %p137, %p138
      %p140 = scmp.ne.s32.totalorder %s132, %s134
      %p141 = scmp.eq.s32.totalorder %s26, 1
      %p142 = por %p140, %p141
      %p143 = scmp.ne.s32.totalorder %s134, %s135
      %p144 = scmp.eq.s32.totalorder %s26, 0
      %p145 = por %p143, %p144
      %p146 = scmp.ne.s32.totalorder %s134, %s135
      %p147 = scmp.eq.s32.totalorder %s27, 1
      %p148 = por %p146, %p147
      %p150 = scmp.ne.s32.totalorder %s135, %s149
      %p151 = scmp.eq.s32.totalorder %s27, 0
      %p152 = por %p150, %p151
      %s154 = sadd.s32 %s153, 1
      %p157 = scmp.eq.s32.totalorder %s21, 1
      %p158 = scmp.ne.s32.totalorder %s153, %s155
      %p159 = scmp.eq.s32.totalorder %s21, 0
      %p160 = por %p158, %p159
      %p161 = scmp.ne.s32.totalorder %s153, %s155
      %p162 = scmp.eq.s32.totalorder %s26, 1
      %p163 = por %p161, %p162
      %p164 = scmp.ne.s32.totalorder %s155, %s156
      %p165 = scmp.eq.s32.totalorder %s26, 0
      %p166 = por %p164, %p165
      %p167 = scmp.ne.s32.totalorder %s155, %s156
      %p168 = scmp.eq.s32.totalorder %s27, 1
      %p169 = por %p167, %p168
      %p171 = scmp.ne.s32.totalorder %s156, %s170
      %p172 = scmp.eq.s32.totalorder %s27, 0
      %p173 = por %p171, %p172
      %s175 = sadd.s32 %s174, 1
      %p178 = scmp.eq.s32.totalorder %s21, 1
      %p179 = scmp.ne.s32.totalorder %s174, %s176
      %p180 = scmp.eq.s32.totalorder %s21, 0
      %p181 = por %p179, %p180
      %p182 = scmp.ne.s32.totalorder %s174, %s176
      %p183 = scmp.eq.s32.totalorder %s26, 1
      %p184 = por %p182, %p183
      %p185 = scmp.ne.s32.totalorder %s176, %s177
      %p186 = scmp.eq.s32.totalorder %s26, 0
      %p187 = por %p185, %p186
      %p188 = scmp.ne.s32.totalorder %s176, %s177
      %p189 = scmp.eq.s32.totalorder %s27, 1
      %p190 = por %p188, %p189
      %p192 = scmp.ne.s32.totalorder %s177, %s191
      %p193 = scmp.eq.s32.totalorder %s27, 0
      %p194 = por %p192, %p193
      %s196 = sadd.s32 %s195, 1
      %p199 = scmp.eq.s32.totalorder %s21, 1
      %p200 = scmp.ne.s32.totalorder %s195, %s197
      %p201 = scmp.eq.s32.totalorder %s21, 0
      %p202 = por %p200, %p201
      %p203 = scmp.ne.s32.totalorder %s195, %s197
      %p204 = scmp.eq.s32.totalorder %s26, 1
      %p205 = por %p203, %p204
      %p206 = scmp.ne.s32.totalorder %s197, %s198
      %p207 = scmp.eq.s32.totalorder %s26, 0
      %p208 = por %p206, %p207
      %p209 = scmp.ne.s32.totalorder %s197, %s198
      %p210 = scmp.eq.s32.totalorder %s27, 1
      %p211 = por %p209, %p210
      %p213 = scmp.ne.s32.totalorder %s198, %s212
      %p214 = scmp.eq.s32.totalorder %s27, 0
      %p215 = por %p213, %p214
      %s217 = sadd.s32 %s216, 1
      %p220 = scmp.eq.s32.totalorder %s21, 1
      %p221 = scmp.ne.s32.totalorder %s216, %s218
      %p222 = scmp.eq.s32.totalorder %s21, 0
      %p223 = por %p221, %p222
      %p224 = scmp.ne.s32.totalorder %s216, %s218
      %p225 = scmp.eq.s32.totalorder %s26, 1
      %p226 = por %p224, %p225
      %p227 = scmp.ne.s32.totalorder %s218, %s219
      %p228 = scmp.eq.s32.totalorder %s26, 0
      %p229 = por %p227, %p228
      %p230 = scmp.ne.s32.totalorder %s218, %s219
      %p231 = scmp.eq.s32.totalorder %s27, 1
      %p232 = por %p230, %p231
      %p234 = scmp.ne.s32.totalorder %s219, %s233
      %p235 = scmp.eq.s32.totalorder %s27, 0
      %p236 = por %p234, %p235
      %s238 = sadd.s32 %s237, 1
      %p241 = scmp.eq.s32.totalorder %s21, 1
      %p242 = scmp.ne.s32.totalorder %s237, %s239
      %p243 = scmp.eq.s32.totalorder %s21, 0
      %p244 = por %p242, %p243
      %p245 = scmp.ne.s32.totalorder %s237, %s239
      %p246 = scmp.eq.s32.totalorder %s26, 1
      %p247 = por %p245, %p246
      %p248 = scmp.ne.s32.totalorder %s239, %s240
      %p249 = scmp.eq.s32.totalorder %s26, 0
      %p250 = por %p248, %p249
      %p251 = scmp.ne.s32.totalorder %s239, %s240
      %p252 = scmp.eq.s32.totalorder %s27, 1
      %p253 = por %p251, %p252
      %p255 = scmp.ne.s32.totalorder %s240, %s254
      %p256 = scmp.eq.s32.totalorder %s27, 0
      %p257 = por %p255, %p256
      %s259 = sadd.s32 %s258, 1
      %p262 = scmp.eq.s32.totalorder %s21, 1
      %p263 = scmp.ne.s32.totalorder %s258, %s260
      %p264 = scmp.eq.s32.totalorder %s21, 0
      %p265 = por %p263, %p264
      %p266 = scmp.ne.s32.totalorder %s258, %s260
      %p267 = scmp.eq.s32.totalorder %s26, 1
      %p268 = por %p266, %p267
      %p269 = scmp.ne.s32.totalorder %s260, %s261
      %p270 = scmp.eq.s32.totalorder %s26, 0
      %p271 = por %p269, %p270
      %p272 = scmp.ne.s32.totalorder %s260, %s261
      %p273 = scmp.eq.s32.totalorder %s27, 1
      %p274 = por %p272, %p273
      %p276 = scmp.ne.s32.totalorder %s261, %s275
      %p277 = scmp.eq.s32.totalorder %s27, 0
      %p278 = por %p276, %p277
      %s280 = sadd.s32 %s279, 1
      %p283 = scmp.eq.s32.totalorder %s21, 1
      %p284 = scmp.ne.s32.totalorder %s279, %s281
      %p285 = scmp.eq.s32.totalorder %s21, 0
      %p286 = por %p284, %p285
      %p287 = scmp.ne.s32.totalorder %s279, %s281
      %p288 = scmp.eq.s32.totalorder %s26, 1
      %p289 = por %p287, %p288
      %p290 = scmp.ne.s32.totalorder %s281, %s282
      %p291 = scmp.eq.s32.totalorder %s26, 0
      %p292 = por %p290, %p291
      %p293 = scmp.ne.s32.totalorder %s281, %s282
      %p294 = scmp.eq.s32.totalorder %s27, 1
      %p295 = por %p293, %p294
      %p297 = scmp.ne.s32.totalorder %s282, %s296
      %p298 = scmp.eq.s32.totalorder %s27, 0
      %p299 = por %p297, %p298
      %s300 = ssub.s32 %s28, %s40
      %p301 = scmp.eq.s32.totalorder %s300, 0
      %s303 = sadd.s32 %s302, 1
      %s304 = scalar_select %p301, %s302, %s303
      %p307 = pneg %p301
      %p308 = scmp.eq.s32.totalorder %s21, 1
      %p309 = por %p307, %p308
      %p310 = scmp.ne.s32.totalorder %s302, %s305
      %p311 = scmp.eq.s32.totalorder %s21, 0
      %p312 = por %p310, %p311
      %p313 = scmp.ne.s32.totalorder %s302, %s305
      %p314 = scmp.eq.s32.totalorder %s26, 1
      %p315 = por %p313, %p314
      %p316 = scmp.ne.s32.totalorder %s305, %s306
      %p317 = scmp.eq.s32.totalorder %s26, 0
      %p318 = por %p316, %p317
      %p319 = scmp.ne.s32.totalorder %s305, %s306
      %p320 = scmp.eq.s32.totalorder %s27, 1
      %p321 = por %p319, %p320
      %p323 = scmp.ne.s32.totalorder %s306, %s322
      %p324 = scmp.eq.s32.totalorder %s27, 0
      %p325 = por %p323, %p324
      %p326 = scmp.le.s32.totalorder 1, %s21
      %p327 = scmp.lt.s32.totalorder %s21, 3
      %p328 = pnand %p326, %p327
      %p329 = pneg %p328
      // Predicated region
      $region9: #{custom_efficientnet_forward.1} parent=5 // pred_check
        _
      $region10: #{custom_efficientnet_forward.1} parent=5 // pred_check_branch
        %331 = sbr.rel (%p328) target = $region12
      $region11: #{custom_efficientnet_forward.1} parent=5 // pred_region
        %s332 = ssub.s32 %s21, 1
        // Predicated region
        $region13: #{custom_efficientnet_forward.1} parent=11 // pred_check
          %p333 = pneg %p82
        $region14: #{custom_efficientnet_forward.1} parent=11 // pred_check_branch
          %335 = sbr.rel (%p333) target = $region16
        $region15: #{custom_efficientnet_forward.1} parent=11 // pred_region
          _
        $region16: #{custom_efficientnet_forward.1} parent=11 // pred_fallthru
          _
        // Predicated region
        $region17: #{custom_efficientnet_forward.1} parent=11 // pred_check
          %p336 = pneg %p103
        $region18: #{custom_efficientnet_forward.1} parent=11 // pred_check_branch
          %338 = sbr.rel (%p336) target = $region20
        $region19: #{custom_efficientnet_forward.1} parent=11 // pred_region
          _
        $region20: #{custom_efficientnet_forward.1} parent=11 // pred_fallthru
          _
        // Predicated region
        $region21: #{custom_efficientnet_forward.1} parent=11 // pred_check
          %p339 = pneg %p124
        $region22: #{custom_efficientnet_forward.1} parent=11 // pred_check_branch
          %341 = sbr.rel (%p339) target = $region24
        $region23: #{custom_efficientnet_forward.1} parent=11 // pred_region
          _
        $region24: #{custom_efficientnet_forward.1} parent=11 // pred_fallthru
          _
        // Predicated region
        $region25: #{custom_efficientnet_forward.1} parent=11 // pred_check
          %p342 = pneg %p145
        $region26: #{custom_efficientnet_forward.1} parent=11 // pred_check_branch
          %344 = sbr.rel (%p342) target = $region28
        $region27: #{custom_efficientnet_forward.1} parent=11 // pred_region
          _
        $region28: #{custom_efficientnet_forward.1} parent=11 // pred_fallthru
          _
        // Predicated region
        $region29: #{custom_efficientnet_forward.1} parent=11 // pred_check
          %p345 = pneg %p166
        $region30: #{custom_efficientnet_forward.1} parent=11 // pred_check_branch
          %347 = sbr.rel (%p345) target = $region32
        $region31: #{custom_efficientnet_forward.1} parent=11 // pred_region
          _
        $region32: #{custom_efficientnet_forward.1} parent=11 // pred_fallthru
          _
        // Predicated region
        $region33: #{custom_efficientnet_forward.1} parent=11 // pred_check
          %p348 = pneg %p187
        $region34: #{custom_efficientnet_forward.1} parent=11 // pred_check_branch
          %350 = sbr.rel (%p348) target = $region36
        $region35: #{custom_efficientnet_forward.1} parent=11 // pred_region
          _
        $region36: #{custom_efficientnet_forward.1} parent=11 // pred_fallthru
          _
        // Predicated region
        $region37: #{custom_efficientnet_forward.1} parent=11 // pred_check
          %p351 = pneg %p208
        $region38: #{custom_efficientnet_forward.1} parent=11 // pred_check_branch
          %353 = sbr.rel (%p351) target = $region40
        $region39: #{custom_efficientnet_forward.1} parent=11 // pred_region
          _
        $region40: #{custom_efficientnet_forward.1} parent=11 // pred_fallthru
          _
        // Predicated region
        $region41: #{custom_efficientnet_forward.1} parent=11 // pred_check
          %p354 = pneg %p229
        $region42: #{custom_efficientnet_forward.1} parent=11 // pred_check_branch
          %356 = sbr.rel (%p354) target = $region44
        $region43: #{custom_efficientnet_forward.1} parent=11 // pred_region
          _
        $region44: #{custom_efficientnet_forward.1} parent=11 // pred_fallthru
          _
        // Predicated region
        $region45: #{custom_efficientnet_forward.1} parent=11 // pred_check
          %p357 = pneg %p250
        $region46: #{custom_efficientnet_forward.1} parent=11 // pred_check_branch
          %359 = sbr.rel (%p357) target = $region48
        $region47: #{custom_efficientnet_forward.1} parent=11 // pred_region
          _
        $region48: #{custom_efficientnet_forward.1} parent=11 // pred_fallthru
          _
        // Predicated region
        $region49: #{custom_efficientnet_forward.1} parent=11 // pred_check
          %p360 = pneg %p271
        $region50: #{custom_efficientnet_forward.1} parent=11 // pred_check_branch
          %362 = sbr.rel (%p360) target = $region52
        $region51: #{custom_efficientnet_forward.1} parent=11 // pred_region
          _
        $region52: #{custom_efficientnet_forward.1} parent=11 // pred_fallthru
          _
        // Predicated region
        $region53: #{custom_efficientnet_forward.1} parent=11 // pred_check
          %p363 = pneg %p292
        $region54: #{custom_efficientnet_forward.1} parent=11 // pred_check_branch
          %365 = sbr.rel (%p363) target = $region56
        $region55: #{custom_efficientnet_forward.1} parent=11 // pred_region
          _
        $region56: #{custom_efficientnet_forward.1} parent=11 // pred_fallthru
          _
      $region12: #{custom_efficientnet_forward.1} parent=5 // pred_fallthru
        _
      %p366 = scmp.lt.s32.totalorder %s21, 2
      // Predicated region
      $region57: #{custom_efficientnet_forward.1} parent=5 // pred_check
        %p367 = pneg %p366
      $region58: #{custom_efficientnet_forward.1} parent=5 // pred_check_branch
        %369 = sbr.rel (%p367) target = $region60
      $region59: #{custom_efficientnet_forward.1} parent=5 // pred_region
        // Predicated region
        $region61: #{custom_efficientnet_forward.1} parent=59 // pred_check
          %p370 = pneg %p55
        $region62: #{custom_efficientnet_forward.1} parent=59 // pred_check_branch
          %372 = sbr.rel (%p370) target = $region64
        $region63: #{custom_efficientnet_forward.1} parent=59 // pred_region
          %s373 = smul.u32 8, %s29
          %p374 = scmp.lt.s32.totalorder %s28, 1
          %s375 = scalar_select %p374, %s28, 1
          %p376 = scmp.lt.s32.totalorder %s373, 7
          %s377 = scalar_select %p376, %s373, 7
          %s378 = smul.addr %s375, 8
          %s379 = sadd.s32 %s377, %s378
          %s380 = smul.addr %s379, 4
          %s381 = scalar_lea.vmem %s0, %s380
          %s382 = smul.u32 8, %s29
        $region64: #{custom_efficientnet_forward.1} parent=59 // pred_fallthru
          _
      $region60: #{custom_efficientnet_forward.1} parent=5 // pred_fallthru
        _
      %p383 = scmp.le.s32.totalorder 1, %s21
      %p384 = scmp.lt.s32.totalorder %s21, 3
      %p385 = pnand %p383, %p384
      %p386 = pneg %p385
      // Predicated region
      $region65: #{custom_efficientnet_forward.1} parent=5 // pred_check
        _
      $region66: #{custom_efficientnet_forward.1} parent=5 // pred_check_branch
        %388 = sbr.rel (%p385) target = $region68
      $region67: #{custom_efficientnet_forward.1} parent=5 // pred_region
        %s389 = ssub.s32 %s21, 1
        %s390 = smul.u32 8, %s31
        %p391 = scmp.lt.s32.totalorder %s30, 1
        %s392 = scalar_select %p391, %s30, 1
        %p393 = scmp.lt.s32.totalorder %s390, 7
        %s394 = scalar_select %p393, %s390, 7
        %s395 = smul.addr %s392, 8
        %s396 = sadd.s32 %s394, %s395
        %s397 = smul.addr %s396, 4
        %s398 = scalar_lea.vmem %s0, %s397
        %p399 = pneg %p61
        %p400 = pneg %p58
        %p401 = pneg %p82
        %p402 = pneg %p79
        %p403 = pneg %p103
        %p404 = pneg %p100
        %p405 = pneg %p124
        %p406 = pneg %p121
        %p407 = pneg %p145
        %p408 = pneg %p142
        %p409 = pneg %p166
        %p410 = pneg %p163
        %p411 = pneg %p187
        %p412 = pneg %p184
        %p413 = pneg %p208
        %p414 = pneg %p205
        %p415 = pneg %p229
        %p416 = pneg %p226
        %p417 = pneg %p250
        %p418 = pneg %p247
        %p419 = pneg %p271
        %p420 = pneg %p268
        %p421 = pneg %p292
        %p422 = pneg %p289
        %p423 = pneg %p318
        %p424 = pneg %p315
        %s425 = sand.u32 %s305, 1
        %s426 = scalar_lea.sflag [#allocation4], %s425
        %s427 = sand.u32 %s305, 1
        %s428 = scalar_lea.vmem [#allocation3], %s427
        %s429 = smul.u32 8, %s31
        %p430 = scmp.lt.s32.totalorder %s30, 1
        %s431 = scalar_select %p430, %s30, 1
        %p432 = scmp.lt.s32.totalorder %s429, 7
        %s433 = scalar_select %p432, %s429, 7
        %s434 = smul.addr %s431, 8
        %s435 = sadd.s32 %s433, %s434
        %s436 = smul.addr %s435, 4
        %s437 = scalar_lea.vmem %s0, %s436
        %s438 = smul.u32 8, %s31
        %p440 = scmp.eq.s32.totalorder %s31, 0
        // Predicated region
        $region69: #{custom_efficientnet_forward.1} parent=67 // pred_check
          %p441 = pneg %p440
        $region70: #{custom_efficientnet_forward.1} parent=67 // pred_check_branch
          %443 = sbr.rel (%p441) target = $region72
        $region71: #{custom_efficientnet_forward.1} parent=67 // pred_region
          %444 = vst [vmem:[#allocation2] sm:$0x1] 0.0
        $region72: #{custom_efficientnet_forward.1} parent=67 // pred_fallthru
          _
        %v445 = vld [vmem:[%s437] sm:$0xf]
        %v446 = vld [vmem:[%s437 + $0x4] sm:$0xf]
        %v447 = vld [vmem:[%s437 + $0x8] sm:$0xf]
        %v448 = vld [vmem:[%s437 + $0xc] sm:$0xf]
        %v449 = vld [vmem:[%s437 + $0x10] sm:$0xf]
        %v450 = vld [vmem:[%s437 + $0x14] sm:$0xf]
        %v451 = vld [vmem:[%s437 + $0x18] sm:$0xf]
        %v452 = vld [vmem:[%s437 + $0x1c] sm:$0xf]
        %v453 = vld [vmem:[%s1] sm:$0xf]
        %v454 = vld [vmem:[%s1 + $0x4] sm:$0xf]
        %v455 = vld [vmem:[%s1 + $0x8] sm:$0xf]
        %v456 = vld [vmem:[%s1 + $0xc] sm:$0xf]
        %v457 = vld [vmem:[%s1 + $0x10] sm:$0x3]
        %v466 = vunpack.c.l.b16 %v445
        %v467 = vunpack.c.l.b16 %v446
        %v468 = vunpack.c.l.b16 %v447
        %v469 = vunpack.c.l.b16 %v448
        %v470 = vunpack.c.l.b16 %v449
        %v471 = vunpack.c.l.b16 %v450
        %v472 = vunpack.c.l.b16 %v451
        %v473 = vunpack.c.l.b16 %v452
        %v474 = vpack.c.b16 %v467, %v466
        %v475 = vpack.c.b16 %v469, %v468
        %v476 = vpack.c.b16 %v471, %v470
        %v477 = vpack.c.b16 %v473, %v472
        %v483 = vunpack.c.l.b16 %v453
        %v484 = vunpack.c.l.b16 %v454
        %v485 = vunpack.c.l.b16 %v455
        %v486 = vunpack.c.l.b16 %v456
        %v487 = vunpack.c.l.b16 %v457
        %v488 = vpack.c.b16 %v484, %v483
        %v489 = vpack.c.b16 %v486, %v485
        %v490 = vpack.c.b16 %v487, %v487
        %vm493 = vcmask 293888
        %v495 = vsel %vm493, %v474, 0
        %v498 = vsel %vm493, %v475, 0
        %v501 = vsel %vm493, %v476, 0
        %v504 = vsel %vm493, %v477, 0
        %vm506 = vcmask 1041408
        %v508 = vsel %vm506, %v490, 0
        %510 = vmatpush.bf16.msra.mxu0 0
        %511 = vmatpush.bf16.msra.mxu0 0
        %512 = vmatpush.bf16.msra.mxu0 0
        %513 = vmatpush.bf16.msra.mxu0 0
        %514 = vmatpush.bf16.msra.mxu0 0
        %515 = vmatpush.bf16.msra.mxu0 %v508
        %516 = vmatpush.bf16.msra.mxu0 %v489
        %517 = vmatpush.bf16.msra.mxu0 %v488
        %518 = vmatmul.bf16.gmra.mxu0 %v495
        %v519 = vpop.f32.mrf.mxu0
        %v520 = vadd.f32 0.0, %v519
        %v521 = vpop.f32.mrf.mxu0
        %v522 = vadd.f32 0.0, %v521
        %523 = vmatmul.bf16.gmra.mxu0 %v498
        %v524 = vpop.f32.mrf.mxu0
        %v525 = vadd.f32 0.0, %v524
        %v526 = vpop.f32.mrf.mxu0
        %v527 = vadd.f32 0.0, %v526
        %528 = vmatmul.bf16.gmra.mxu0 %v501
        %v529 = vpop.f32.mrf.mxu0
        %v530 = vadd.f32 0.0, %v529
        %v531 = vpop.f32.mrf.mxu0
        %v532 = vadd.f32 0.0, %v531
        %533 = vmatmul.bf16.gmra.mxu0 %v504
        %v534 = vpop.f32.mrf.mxu0
        %v535 = vadd.f32 0.0, %v534
        %v536 = vpop.f32.mrf.mxu0
        %v537 = vadd.f32 0.0, %v536
        %538 = vdwg.mxu0
        %v539 = vld [vmem:[%s2] sm:$0x1]
        %v541 = vperm.slane %v539, 0
        %v543 = vmul.f32 %v520, %v541
        %v544 = vmul.f32 %v522, %v541
        %v545 = vmul.f32 %v525, %v541
        %v546 = vmul.f32 %v527, %v541
        %v547 = vmul.f32 %v530, %v541
        %v548 = vmul.f32 %v532, %v541
        %v549 = vmul.f32 %v535, %v541
        %v550 = vmul.f32 %v537, %v541
        %v551 = vld [vmem:[%s3] sm:$0x1]
        %v553 = vperm.slane %v551, 0
        %v555 = vadd.f32 %v543, %v553
        %v556 = vadd.f32 %v544, %v553
        %v557 = vadd.f32 %v545, %v553
        %v558 = vadd.f32 %v546, %v553
        %v559 = vadd.f32 %v547, %v553
        %v560 = vadd.f32 %v548, %v553
        %v561 = vadd.f32 %v549, %v553
        %v562 = vadd.f32 %v550, %v553
        %v563 = vxor.u32 %v555, 2147483648
        %v564 = vxor.u32 %v556, 2147483648
        %v565 = vxor.u32 %v557, 2147483648
        %v566 = vxor.u32 %v558, 2147483648
        %v567 = vxor.u32 %v559, 2147483648
        %v568 = vxor.u32 %v560, 2147483648
        %v569 = vxor.u32 %v561, 2147483648
        %v570 = vxor.u32 %v562, 2147483648
        %v571 = vmul.f32 %v563, 1.442695
        %v572 = vpow.pop %v571
        %v573 = vmul.f32 %v564, 1.442695
        %v574 = vpow.pop %v573
        %v575 = vmul.f32 %v565, 1.442695
        %v576 = vpow.pop %v575
        %v577 = vmul.f32 %v566, 1.442695
        %v578 = vpow.pop %v577
        %v579 = vmul.f32 %v567, 1.442695
        %v580 = vpow.pop %v579
        %v581 = vmul.f32 %v568, 1.442695
        %v582 = vpow.pop %v581
        %v583 = vmul.f32 %v569, 1.442695
        %v584 = vpow.pop %v583
        %v585 = vmul.f32 %v570, 1.442695
        %v586 = vpow.pop %v585
        %v587 = vadd.f32 %v572, 1.0
        %v588 = vadd.f32 %v574, 1.0
        %v589 = vadd.f32 %v576, 1.0
        %v590 = vadd.f32 %v578, 1.0
        %v591 = vadd.f32 %v580, 1.0
        %v592 = vadd.f32 %v582, 1.0
        %v593 = vadd.f32 %v584, 1.0
        %v594 = vadd.f32 %v586, 1.0
        %v595 = vrcp.pop %v587
        %v596 = vmul.f32 %v587, %v595
        %v597 = vsub.f32 1.0, %v596
        %v598 = vmul.f32 %v595, %v597
        %v599 = vadd.f32 %v595, %v598
        %vm600 = vweird.f32 %v587
        %vm601 = vweird.f32 %v595
        %vm602 = vmor %vm600, %vm601
        %v603 = vsel %vm602, %v595, %v599
        %v604 = vand.u32 2147483647, %v587
        %vm605 = vcmp.eq.f32.partialorder %v604, 8.507059e+37
        %v606 = vand.u32 %v587, 2147483648
        %v607 = vor.u32 1.1754944e-38, %v606
        %v608 = vsel %vm605, %v607, %v603
        %v609 = vmul.f32 1.0, %v608
        %v610 = vrcp.pop %v588
        %v611 = vmul.f32 %v588, %v610
        %v612 = vsub.f32 1.0, %v611
        %v613 = vmul.f32 %v610, %v612
        %v614 = vadd.f32 %v610, %v613
        %vm615 = vweird.f32 %v588
        %vm616 = vweird.f32 %v610
        %vm617 = vmor %vm615, %vm616
        %v618 = vsel %vm617, %v610, %v614
        %v619 = vand.u32 2147483647, %v588
        %vm620 = vcmp.eq.f32.partialorder %v619, 8.507059e+37
        %v621 = vand.u32 %v588, 2147483648
        %v622 = vor.u32 1.1754944e-38, %v621
        %v623 = vsel %vm620, %v622, %v618
        %v624 = vmul.f32 1.0, %v623
        %v625 = vrcp.pop %v589
        %v626 = vmul.f32 %v589, %v625
        %v627 = vsub.f32 1.0, %v626
        %v628 = vmul.f32 %v625, %v627
        %v629 = vadd.f32 %v625, %v628
        %vm630 = vweird.f32 %v589
        %vm631 = vweird.f32 %v625
        %vm632 = vmor %vm630, %vm631
        %v633 = vsel %vm632, %v625, %v629
        %v634 = vand.u32 2147483647, %v589
        %vm635 = vcmp.eq.f32.partialorder %v634, 8.507059e+37
        %v636 = vand.u32 %v589, 2147483648
        %v637 = vor.u32 1.1754944e-38, %v636
        %v638 = vsel %vm635, %v637, %v633
        %v639 = vmul.f32 1.0, %v638
        %v640 = vrcp.pop %v590
        %v641 = vmul.f32 %v590, %v640
        %v642 = vsub.f32 1.0, %v641
        %v643 = vmul.f32 %v640, %v642
        %v644 = vadd.f32 %v640, %v643
        %vm645 = vweird.f32 %v590
        %vm646 = vweird.f32 %v640
        %vm647 = vmor %vm645, %vm646
        %v648 = vsel %vm647, %v640, %v644
        %v649 = vand.u32 2147483647, %v590
        %vm650 = vcmp.eq.f32.partialorder %v649, 8.507059e+37
        %v651 = vand.u32 %v590, 2147483648
        %v652 = vor.u32 1.1754944e-38, %v651
        %v653 = vsel %vm650, %v652, %v648
        %v654 = vmul.f32 1.0, %v653
        %v655 = vrcp.pop %v591
        %v656 = vmul.f32 %v591, %v655
        %v657 = vsub.f32 1.0, %v656
        %v658 = vmul.f32 %v655, %v657
        %v659 = vadd.f32 %v655, %v658
        %vm660 = vweird.f32 %v591
        %vm661 = vweird.f32 %v655
        %vm662 = vmor %vm660, %vm661
        %v663 = vsel %vm662, %v655, %v659
        %v664 = vand.u32 2147483647, %v591
        %vm665 = vcmp.eq.f32.partialorder %v664, 8.507059e+37
        %v666 = vand.u32 %v591, 2147483648
        %v667 = vor.u32 1.1754944e-38, %v666
        %v668 = vsel %vm665, %v667, %v663
        %v669 = vmul.f32 1.0, %v668
        %v670 = vrcp.pop %v592
        %v671 = vmul.f32 %v592, %v670
        %v672 = vsub.f32 1.0, %v671
        %v673 = vmul.f32 %v670, %v672
        %v674 = vadd.f32 %v670, %v673
        %vm675 = vweird.f32 %v592
        %vm676 = vweird.f32 %v670
        %vm677 = vmor %vm675, %vm676
        %v678 = vsel %vm677, %v670, %v674
        %v679 = vand.u32 2147483647, %v592
        %vm680 = vcmp.eq.f32.partialorder %v679, 8.507059e+37
        %v681 = vand.u32 %v592, 2147483648
        %v682 = vor.u32 1.1754944e-38, %v681
        %v683 = vsel %vm680, %v682, %v678
        %v684 = vmul.f32 1.0, %v683
        %v685 = vrcp.pop %v593
        %v686 = vmul.f32 %v593, %v685
        %v687 = vsub.f32 1.0, %v686
        %v688 = vmul.f32 %v685, %v687
        %v689 = vadd.f32 %v685, %v688
        %vm690 = vweird.f32 %v593
        %vm691 = vweird.f32 %v685
        %vm692 = vmor %vm690, %vm691
        %v693 = vsel %vm692, %v685, %v689
        %v694 = vand.u32 2147483647, %v593
        %vm695 = vcmp.eq.f32.partialorder %v694, 8.507059e+37
        %v696 = vand.u32 %v593, 2147483648
        %v697 = vor.u32 1.1754944e-38, %v696
        %v698 = vsel %vm695, %v697, %v693
        %v699 = vmul.f32 1.0, %v698
        %v700 = vrcp.pop %v594
        %v701 = vmul.f32 %v594, %v700
        %v702 = vsub.f32 1.0, %v701
        %v703 = vmul.f32 %v700, %v702
        %v704 = vadd.f32 %v700, %v703
        %vm705 = vweird.f32 %v594
        %vm706 = vweird.f32 %v700
        %vm707 = vmor %vm705, %vm706
        %v708 = vsel %vm707, %v700, %v704
        %v709 = vand.u32 2147483647, %v594
        %vm710 = vcmp.eq.f32.partialorder %v709, 8.507059e+37
        %v711 = vand.u32 %v594, 2147483648
        %v712 = vor.u32 1.1754944e-38, %v711
        %v713 = vsel %vm710, %v712, %v708
        %v714 = vmul.f32 1.0, %v713
        %v715 = vmul.f32 %v555, %v609
        %v716 = vmul.f32 %v556, %v624
        %v717 = vmul.f32 %v557, %v639
        %v718 = vmul.f32 %v558, %v654
        %v719 = vmul.f32 %v559, %v669
        %v720 = vmul.f32 %v560, %v684
        %v721 = vmul.f32 %v561, %v699
        %v722 = vmul.f32 %v562, %v714
        %v723 = vpack.c.bf16 %v716, %v715
        %v724 = vpack.c.bf16 %v718, %v717
        %v725 = vpack.c.bf16 %v720, %v719
        %v726 = vpack.c.bf16 %v722, %v721
        %v727 = vld [vmem:[%s4] sm:$0xf]
        %v728 = vld [vmem:[%s4 + $0x4] sm:$0xf]
        %v729 = vld [vmem:[%s4 + $0x8] sm:$0xf]
        %v730 = vld [vmem:[%s4 + $0xc] sm:$0xf]
        %v735 = vunpack.c.l.b16 %v727
        %v736 = vunpack.c.l.b16 %v728
        %v737 = vunpack.c.l.b16 %v729
        %v738 = vunpack.c.l.b16 %v730
        %v739 = vpack.c.b16 %v736, %v735
        %v740 = vpack.c.b16 %v738, %v737
        %vm743 = vcmask 261120
        %v745 = vsel %vm743, %v723, 0
        %v748 = vsel %vm743, %v724, 0
        %v751 = vsel %vm743, %v725, 0
        %v754 = vsel %vm743, %v726, 0
        %756 = vmatpush.bf16.msra.mxu0 0
        %757 = vmatpush.bf16.msra.mxu0 0
        %758 = vmatpush.bf16.msra.mxu0 0
        %759 = vmatpush.bf16.msra.mxu0 0
        %760 = vmatpush.bf16.msra.mxu0 0
        %761 = vmatpush.bf16.msra.mxu0 0
        %762 = vmatpush.bf16.msra.mxu0 %v740
        %763 = vmatpush.bf16.msra.mxu0 %v739
        %764 = vmatmul.bf16.gmra.mxu0 %v745
        %v765 = vpop.f32.mrf.mxu0
        %v766 = vadd.f32 0.0, %v765
        %v767 = vpop.f32.mrf.mxu0
        %v768 = vadd.f32 0.0, %v767
        %769 = vmatmul.bf16.gmra.mxu0 %v748
        %v770 = vpop.f32.mrf.mxu0
        %v771 = vadd.f32 0.0, %v770
        %v772 = vpop.f32.mrf.mxu0
        %v773 = vadd.f32 0.0, %v772
        %774 = vmatmul.bf16.gmra.mxu0 %v751
        %v775 = vpop.f32.mrf.mxu0
        %v776 = vadd.f32 0.0, %v775
        %v777 = vpop.f32.mrf.mxu0
        %v778 = vadd.f32 0.0, %v777
        %779 = vmatmul.bf16.gmra.mxu0 %v754
        %v780 = vpop.f32.mrf.mxu0
        %v781 = vadd.f32 0.0, %v780
        %v782 = vpop.f32.mrf.mxu0
        %v783 = vadd.f32 0.0, %v782
        %784 = vdwg.mxu0
        %v785 = vld [vmem:[%s5] sm:$0x1]
        %v787 = vperm.slane %v785, 0
        %v789 = vmul.f32 %v766, %v787
        %v790 = vmul.f32 %v768, %v787
        %v791 = vmul.f32 %v771, %v787
        %v792 = vmul.f32 %v773, %v787
        %v793 = vmul.f32 %v776, %v787
        %v794 = vmul.f32 %v778, %v787
        %v795 = vmul.f32 %v781, %v787
        %v796 = vmul.f32 %v783, %v787
        %v797 = vld [vmem:[%s6] sm:$0x1]
        %v799 = vperm.slane %v797, 0
        %v801 = vadd.f32 %v789, %v799
        %v802 = vadd.f32 %v790, %v799
        %v803 = vadd.f32 %v791, %v799
        %v804 = vadd.f32 %v792, %v799
        %v805 = vadd.f32 %v793, %v799
        %v806 = vadd.f32 %v794, %v799
        %v807 = vadd.f32 %v795, %v799
        %v808 = vadd.f32 %v796, %v799
        %v809 = vxor.u32 %v801, 2147483648
        %v810 = vxor.u32 %v802, 2147483648
        %v811 = vxor.u32 %v803, 2147483648
        %v812 = vxor.u32 %v804, 2147483648
        %v813 = vxor.u32 %v805, 2147483648
        %v814 = vxor.u32 %v806, 2147483648
        %v815 = vxor.u32 %v807, 2147483648
        %v816 = vxor.u32 %v808, 2147483648
        %v817 = vmul.f32 %v809, 1.442695
        %v818 = vpow.pop %v817
        %v819 = vmul.f32 %v810, 1.442695
        %v820 = vpow.pop %v819
        %v821 = vmul.f32 %v811, 1.442695
        %v822 = vpow.pop %v821
        %v823 = vmul.f32 %v812, 1.442695
        %v824 = vpow.pop %v823
        %v825 = vmul.f32 %v813, 1.442695
        %v826 = vpow.pop %v825
        %v827 = vmul.f32 %v814, 1.442695
        %v828 = vpow.pop %v827
        %v829 = vmul.f32 %v815, 1.442695
        %v830 = vpow.pop %v829
        %v831 = vmul.f32 %v816, 1.442695
        %v832 = vpow.pop %v831
        %v833 = vadd.f32 %v818, 1.0
        %v834 = vadd.f32 %v820, 1.0
        %v835 = vadd.f32 %v822, 1.0
        %v836 = vadd.f32 %v824, 1.0
        %v837 = vadd.f32 %v826, 1.0
        %v838 = vadd.f32 %v828, 1.0
        %v839 = vadd.f32 %v830, 1.0
        %v840 = vadd.f32 %v832, 1.0
        %v841 = vrcp.pop %v833
        %v842 = vmul.f32 %v833, %v841
        %v843 = vsub.f32 1.0, %v842
        %v844 = vmul.f32 %v841, %v843
        %v845 = vadd.f32 %v841, %v844
        %vm846 = vweird.f32 %v833
        %vm847 = vweird.f32 %v841
        %vm848 = vmor %vm846, %vm847
        %v849 = vsel %vm848, %v841, %v845
        %v850 = vand.u32 2147483647, %v833
        %vm851 = vcmp.eq.f32.partialorder %v850, 8.507059e+37
        %v852 = vand.u32 %v833, 2147483648
        %v853 = vor.u32 1.1754944e-38, %v852
        %v854 = vsel %vm851, %v853, %v849
        %v855 = vmul.f32 1.0, %v854
        %v856 = vrcp.pop %v834
        %v857 = vmul.f32 %v834, %v856
        %v858 = vsub.f32 1.0, %v857
        %v859 = vmul.f32 %v856, %v858
        %v860 = vadd.f32 %v856, %v859
        %vm861 = vweird.f32 %v834
        %vm862 = vweird.f32 %v856
        %vm863 = vmor %vm861, %vm862
        %v864 = vsel %vm863, %v856, %v860
        %v865 = vand.u32 2147483647, %v834
        %vm866 = vcmp.eq.f32.partialorder %v865, 8.507059e+37
        %v867 = vand.u32 %v834, 2147483648
        %v868 = vor.u32 1.1754944e-38, %v867
        %v869 = vsel %vm866, %v868, %v864
        %v870 = vmul.f32 1.0, %v869
        %v871 = vrcp.pop %v835
        %v872 = vmul.f32 %v835, %v871
        %v873 = vsub.f32 1.0, %v872
        %v874 = vmul.f32 %v871, %v873
        %v875 = vadd.f32 %v871, %v874
        %vm876 = vweird.f32 %v835
        %vm877 = vweird.f32 %v871
        %vm878 = vmor %vm876, %vm877
        %v879 = vsel %vm878, %v871, %v875
        %v880 = vand.u32 2147483647, %v835
        %vm881 = vcmp.eq.f32.partialorder %v880, 8.507059e+37
        %v882 = vand.u32 %v835, 2147483648
        %v883 = vor.u32 1.1754944e-38, %v882
        %v884 = vsel %vm881, %v883, %v879
        %v885 = vmul.f32 1.0, %v884
        %v886 = vrcp.pop %v836
        %v887 = vmul.f32 %v836, %v886
        %v888 = vsub.f32 1.0, %v887
        %v889 = vmul.f32 %v886, %v888
        %v890 = vadd.f32 %v886, %v889
        %vm891 = vweird.f32 %v836
        %vm892 = vweird.f32 %v886
        %vm893 = vmor %vm891, %vm892
        %v894 = vsel %vm893, %v886, %v890
        %v895 = vand.u32 2147483647, %v836
        %vm896 = vcmp.eq.f32.partialorder %v895, 8.507059e+37
        %v897 = vand.u32 %v836, 2147483648
        %v898 = vor.u32 1.1754944e-38, %v897
        %v899 = vsel %vm896, %v898, %v894
        %v900 = vmul.f32 1.0, %v899
        %v901 = vrcp.pop %v837
        %v902 = vmul.f32 %v837, %v901
        %v903 = vsub.f32 1.0, %v902
        %v904 = vmul.f32 %v901, %v903
        %v905 = vadd.f32 %v901, %v904
        %vm906 = vweird.f32 %v837
        %vm907 = vweird.f32 %v901
        %vm908 = vmor %vm906, %vm907
        %v909 = vsel %vm908, %v901, %v905
        %v910 = vand.u32 2147483647, %v837
        %vm911 = vcmp.eq.f32.partialorder %v910, 8.507059e+37
        %v912 = vand.u32 %v837, 2147483648
        %v913 = vor.u32 1.1754944e-38, %v912
        %v914 = vsel %vm911, %v913, %v909
        %v915 = vmul.f32 1.0, %v914
        %v916 = vrcp.pop %v838
        %v917 = vmul.f32 %v838, %v916
        %v918 = vsub.f32 1.0, %v917
        %v919 = vmul.f32 %v916, %v918
        %v920 = vadd.f32 %v916, %v919
        %vm921 = vweird.f32 %v838
        %vm922 = vweird.f32 %v916
        %vm923 = vmor %vm921, %vm922
        %v924 = vsel %vm923, %v916, %v920
        %v925 = vand.u32 2147483647, %v838
        %vm926 = vcmp.eq.f32.partialorder %v925, 8.507059e+37
        %v927 = vand.u32 %v838, 2147483648
        %v928 = vor.u32 1.1754944e-38, %v927
        %v929 = vsel %vm926, %v928, %v924
        %v930 = vmul.f32 1.0, %v929
        %v931 = vrcp.pop %v839
        %v932 = vmul.f32 %v839, %v931
        %v933 = vsub.f32 1.0, %v932
        %v934 = vmul.f32 %v931, %v933
        %v935 = vadd.f32 %v931, %v934
        %vm936 = vweird.f32 %v839
        %vm937 = vweird.f32 %v931
        %vm938 = vmor %vm936, %vm937
        %v939 = vsel %vm938, %v931, %v935
        %v940 = vand.u32 2147483647, %v839
        %vm941 = vcmp.eq.f32.partialorder %v940, 8.507059e+37
        %v942 = vand.u32 %v839, 2147483648
        %v943 = vor.u32 1.1754944e-38, %v942
        %v944 = vsel %vm941, %v943, %v939
        %v945 = vmul.f32 1.0, %v944
        %v946 = vrcp.pop %v840
        %v947 = vmul.f32 %v840, %v946
        %v948 = vsub.f32 1.0, %v947
        %v949 = vmul.f32 %v946, %v948
        %v950 = vadd.f32 %v946, %v949
        %vm951 = vweird.f32 %v840
        %vm952 = vweird.f32 %v946
        %vm953 = vmor %vm951, %vm952
        %v954 = vsel %vm953, %v946, %v950
        %v955 = vand.u32 2147483647, %v840
        %vm956 = vcmp.eq.f32.partialorder %v955, 8.507059e+37
        %v957 = vand.u32 %v840, 2147483648
        %v958 = vor.u32 1.1754944e-38, %v957
        %v959 = vsel %vm956, %v958, %v954
        %v960 = vmul.f32 1.0, %v959
        %v961 = vmul.f32 %v801, %v855
        %v962 = vmul.f32 %v802, %v870
        %v963 = vmul.f32 %v803, %v885
        %v964 = vmul.f32 %v804, %v900
        %v965 = vmul.f32 %v805, %v915
        %v966 = vmul.f32 %v806, %v930
        %v967 = vmul.f32 %v807, %v945
        %v968 = vmul.f32 %v808, %v960
        %v969 = vpack.c.bf16 %v962, %v961
        %v970 = vpack.c.bf16 %v964, %v963
        %v971 = vpack.c.bf16 %v966, %v965
        %v972 = vpack.c.bf16 %v968, %v967
        %v973 = vld [vmem:[%s7] sm:$0xf]
        %v974 = vld [vmem:[%s7 + $0x4] sm:$0xf]
        %v975 = vld [vmem:[%s7 + $0x8] sm:$0xf]
        %v976 = vld [vmem:[%s7 + $0xc] sm:$0xf]
        %v977 = vld [vmem:[%s7 + $0x10] sm:$0xf]
        %v978 = vld [vmem:[%s7 + $0x14] sm:$0xf]
        %v979 = vld [vmem:[%s7 + $0x18] sm:$0xf]
        %v980 = vld [vmem:[%s7 + $0x1c] sm:$0xf]
        %v989 = vunpack.c.l.b16 %v973
        %v990 = vunpack.c.l.b16 %v974
        %v991 = vunpack.c.l.b16 %v975
        %v992 = vunpack.c.l.b16 %v976
        %v993 = vunpack.c.l.b16 %v977
        %v994 = vunpack.c.l.b16 %v978
        %v995 = vunpack.c.l.b16 %v979
        %v996 = vunpack.c.l.b16 %v980
        %v997 = vpack.c.b16 %v990, %v989
        %v998 = vpack.c.b16 %v992, %v991
        %v999 = vpack.c.b16 %v994, %v993
        %v1000 = vpack.c.b16 %v996, %v995
        %vm1005 = vcmask 523264
        %v1007 = vsel %vm1005, %v969, 0
        %v1010 = vsel %vm1005, %v970, 0
        %v1013 = vsel %vm1005, %v971, 0
        %v1016 = vsel %vm1005, %v972, 0
        %1018 = vmatpush.bf16.msra.mxu0 0
        %1019 = vmatpush.bf16.msra.mxu0 0
        %1020 = vmatpush.bf16.msra.mxu0 0
        %1021 = vmatpush.bf16.msra.mxu0 0
        %1022 = vmatpush.bf16.msra.mxu0 %v1000
        %1023 = vmatpush.bf16.msra.mxu0 %v999
        %1024 = vmatpush.bf16.msra.mxu0 %v998
        %1025 = vmatpush.bf16.msra.mxu0 %v997
        %1026 = vmatmul.bf16.gmra.mxu0 %v1007
        %v1027 = vpop.f32.mrf.mxu0
        %v1028 = vadd.f32 0.0, %v1027
        %v1029 = vpop.f32.mrf.mxu0
        %v1030 = vadd.f32 0.0, %v1029
        %1031 = vmatmul.bf16.gmra.mxu0 %v1010
        %v1032 = vpop.f32.mrf.mxu0
        %v1033 = vadd.f32 0.0, %v1032
        %v1034 = vpop.f32.mrf.mxu0
        %v1035 = vadd.f32 0.0, %v1034
        %1036 = vmatmul.bf16.gmra.mxu0 %v1013
        %v1037 = vpop.f32.mrf.mxu0
        %v1038 = vadd.f32 0.0, %v1037
        %v1039 = vpop.f32.mrf.mxu0
        %v1040 = vadd.f32 0.0, %v1039
        %1041 = vmatmul.bf16.gmra.mxu0 %v1016
        %v1042 = vpop.f32.mrf.mxu0
        %v1043 = vadd.f32 0.0, %v1042
        %v1044 = vpop.f32.mrf.mxu0
        %v1045 = vadd.f32 0.0, %v1044
        %1046 = vdwg.mxu0
        %v1047 = vld [vmem:[%s8] sm:$0x1]
        %v1049 = vperm.slane %v1047, 0
        %v1051 = vmul.f32 %v1028, %v1049
        %v1052 = vmul.f32 %v1030, %v1049
        %v1053 = vmul.f32 %v1033, %v1049
        %v1054 = vmul.f32 %v1035, %v1049
        %v1055 = vmul.f32 %v1038, %v1049
        %v1056 = vmul.f32 %v1040, %v1049
        %v1057 = vmul.f32 %v1043, %v1049
        %v1058 = vmul.f32 %v1045, %v1049
        %v1059 = vld [vmem:[%s9] sm:$0x1]
        %v1061 = vperm.slane %v1059, 0
        %v1063 = vadd.f32 %v1051, %v1061
        %v1064 = vadd.f32 %v1052, %v1061
        %v1065 = vadd.f32 %v1053, %v1061
        %v1066 = vadd.f32 %v1054, %v1061
        %v1067 = vadd.f32 %v1055, %v1061
        %v1068 = vadd.f32 %v1056, %v1061
        %v1069 = vadd.f32 %v1057, %v1061
        %v1070 = vadd.f32 %v1058, %v1061
        %v1071 = vxor.u32 %v1063, 2147483648
        %v1072 = vxor.u32 %v1064, 2147483648
        %v1073 = vxor.u32 %v1065, 2147483648
        %v1074 = vxor.u32 %v1066, 2147483648
        %v1075 = vxor.u32 %v1067, 2147483648
        %v1076 = vxor.u32 %v1068, 2147483648
        %v1077 = vxor.u32 %v1069, 2147483648
        %v1078 = vxor.u32 %v1070, 2147483648
        %v1079 = vmul.f32 %v1071, 1.442695
        %v1080 = vpow.pop %v1079
        %v1081 = vmul.f32 %v1072, 1.442695
        %v1082 = vpow.pop %v1081
        %v1083 = vmul.f32 %v1073, 1.442695
        %v1084 = vpow.pop %v1083
        %v1085 = vmul.f32 %v1074, 1.442695
        %v1086 = vpow.pop %v1085
        %v1087 = vmul.f32 %v1075, 1.442695
        %v1088 = vpow.pop %v1087
        %v1089 = vmul.f32 %v1076, 1.442695
        %v1090 = vpow.pop %v1089
        %v1091 = vmul.f32 %v1077, 1.442695
        %v1092 = vpow.pop %v1091
        %v1093 = vmul.f32 %v1078, 1.442695
        %v1094 = vpow.pop %v1093
        %v1095 = vadd.f32 %v1080, 1.0
        %v1096 = vadd.f32 %v1082, 1.0
        %v1097 = vadd.f32 %v1084, 1.0
        %v1098 = vadd.f32 %v1086, 1.0
        %v1099 = vadd.f32 %v1088, 1.0
        %v1100 = vadd.f32 %v1090, 1.0
        %v1101 = vadd.f32 %v1092, 1.0
        %v1102 = vadd.f32 %v1094, 1.0
        %v1103 = vrcp.pop %v1095
        %v1104 = vmul.f32 %v1095, %v1103
        %v1105 = vsub.f32 1.0, %v1104
        %v1106 = vmul.f32 %v1103, %v1105
        %v1107 = vadd.f32 %v1103, %v1106
        %vm1108 = vweird.f32 %v1095
        %vm1109 = vweird.f32 %v1103
        %vm1110 = vmor %vm1108, %vm1109
        %v1111 = vsel %vm1110, %v1103, %v1107
        %v1112 = vand.u32 2147483647, %v1095
        %vm1113 = vcmp.eq.f32.partialorder %v1112, 8.507059e+37
        %v1114 = vand.u32 %v1095, 2147483648
        %v1115 = vor.u32 1.1754944e-38, %v1114
        %v1116 = vsel %vm1113, %v1115, %v1111
        %v1117 = vmul.f32 1.0, %v1116
        %v1118 = vrcp.pop %v1096
        %v1119 = vmul.f32 %v1096, %v1118
        %v1120 = vsub.f32 1.0, %v1119
        %v1121 = vmul.f32 %v1118, %v1120
        %v1122 = vadd.f32 %v1118, %v1121
        %vm1123 = vweird.f32 %v1096
        %vm1124 = vweird.f32 %v1118
        %vm1125 = vmor %vm1123, %vm1124
        %v1126 = vsel %vm1125, %v1118, %v1122
        %v1127 = vand.u32 2147483647, %v1096
        %vm1128 = vcmp.eq.f32.partialorder %v1127, 8.507059e+37
        %v1129 = vand.u32 %v1096, 2147483648
        %v1130 = vor.u32 1.1754944e-38, %v1129
        %v1131 = vsel %vm1128, %v1130, %v1126
        %v1132 = vmul.f32 1.0, %v1131
        %v1133 = vrcp.pop %v1097
        %v1134 = vmul.f32 %v1097, %v1133
        %v1135 = vsub.f32 1.0, %v1134
        %v1136 = vmul.f32 %v1133, %v1135
        %v1137 = vadd.f32 %v1133, %v1136
        %vm1138 = vweird.f32 %v1097
        %vm1139 = vweird.f32 %v1133
        %vm1140 = vmor %vm1138, %vm1139
        %v1141 = vsel %vm1140, %v1133, %v1137
        %v1142 = vand.u32 2147483647, %v1097
        %vm1143 = vcmp.eq.f32.partialorder %v1142, 8.507059e+37
        %v1144 = vand.u32 %v1097, 2147483648
        %v1145 = vor.u32 1.1754944e-38, %v1144
        %v1146 = vsel %vm1143, %v1145, %v1141
        %v1147 = vmul.f32 1.0, %v1146
        %v1148 = vrcp.pop %v1098
        %v1149 = vmul.f32 %v1098, %v1148
        %v1150 = vsub.f32 1.0, %v1149
        %v1151 = vmul.f32 %v1148, %v1150
        %v1152 = vadd.f32 %v1148, %v1151
        %vm1153 = vweird.f32 %v1098
        %vm1154 = vweird.f32 %v1148
        %vm1155 = vmor %vm1153, %vm1154
        %v1156 = vsel %vm1155, %v1148, %v1152
        %v1157 = vand.u32 2147483647, %v1098
        %vm1158 = vcmp.eq.f32.partialorder %v1157, 8.507059e+37
        %v1159 = vand.u32 %v1098, 2147483648
        %v1160 = vor.u32 1.1754944e-38, %v1159
        %v1161 = vsel %vm1158, %v1160, %v1156
        %v1162 = vmul.f32 1.0, %v1161
        %v1163 = vrcp.pop %v1099
        %v1164 = vmul.f32 %v1099, %v1163
        %v1165 = vsub.f32 1.0, %v1164
        %v1166 = vmul.f32 %v1163, %v1165
        %v1167 = vadd.f32 %v1163, %v1166
        %vm1168 = vweird.f32 %v1099
        %vm1169 = vweird.f32 %v1163
        %vm1170 = vmor %vm1168, %vm1169
        %v1171 = vsel %vm1170, %v1163, %v1167
        %v1172 = vand.u32 2147483647, %v1099
        %vm1173 = vcmp.eq.f32.partialorder %v1172, 8.507059e+37
        %v1174 = vand.u32 %v1099, 2147483648
        %v1175 = vor.u32 1.1754944e-38, %v1174
        %v1176 = vsel %vm1173, %v1175, %v1171
        %v1177 = vmul.f32 1.0, %v1176
        %v1178 = vrcp.pop %v1100
        %v1179 = vmul.f32 %v1100, %v1178
        %v1180 = vsub.f32 1.0, %v1179
        %v1181 = vmul.f32 %v1178, %v1180
        %v1182 = vadd.f32 %v1178, %v1181
        %vm1183 = vweird.f32 %v1100
        %vm1184 = vweird.f32 %v1178
        %vm1185 = vmor %vm1183, %vm1184
        %v1186 = vsel %vm1185, %v1178, %v1182
        %v1187 = vand.u32 2147483647, %v1100
        %vm1188 = vcmp.eq.f32.partialorder %v1187, 8.507059e+37
        %v1189 = vand.u32 %v1100, 2147483648
        %v1190 = vor.u32 1.1754944e-38, %v1189
        %v1191 = vsel %vm1188, %v1190, %v1186
        %v1192 = vmul.f32 1.0, %v1191
        %v1193 = vrcp.pop %v1101
        %v1194 = vmul.f32 %v1101, %v1193
        %v1195 = vsub.f32 1.0, %v1194
        %v1196 = vmul.f32 %v1193, %v1195
        %v1197 = vadd.f32 %v1193, %v1196
        %vm1198 = vweird.f32 %v1101
        %vm1199 = vweird.f32 %v1193
        %vm1200 = vmor %vm1198, %vm1199
        %v1201 = vsel %vm1200, %v1193, %v1197
        %v1202 = vand.u32 2147483647, %v1101
        %vm1203 = vcmp.eq.f32.partialorder %v1202, 8.507059e+37
        %v1204 = vand.u32 %v1101, 2147483648
        %v1205 = vor.u32 1.1754944e-38, %v1204
        %v1206 = vsel %vm1203, %v1205, %v1201
        %v1207 = vmul.f32 1.0, %v1206
        %v1208 = vrcp.pop %v1102
        %v1209 = vmul.f32 %v1102, %v1208
        %v1210 = vsub.f32 1.0, %v1209
        %v1211 = vmul.f32 %v1208, %v1210
        %v1212 = vadd.f32 %v1208, %v1211
        %vm1213 = vweird.f32 %v1102
        %vm1214 = vweird.f32 %v1208
        %vm1215 = vmor %vm1213, %vm1214
        %v1216 = vsel %vm1215, %v1208, %v1212
        %v1217 = vand.u32 2147483647, %v1102
        %vm1218 = vcmp.eq.f32.partialorder %v1217, 8.507059e+37
        %v1219 = vand.u32 %v1102, 2147483648
        %v1220 = vor.u32 1.1754944e-38, %v1219
        %v1221 = vsel %vm1218, %v1220, %v1216
        %v1222 = vmul.f32 1.0, %v1221
        %v1223 = vmul.f32 %v1063, %v1117
        %v1224 = vmul.f32 %v1064, %v1132
        %v1225 = vmul.f32 %v1065, %v1147
        %v1226 = vmul.f32 %v1066, %v1162
        %v1227 = vmul.f32 %v1067, %v1177
        %v1228 = vmul.f32 %v1068, %v1192
        %v1229 = vmul.f32 %v1069, %v1207
        %v1230 = vmul.f32 %v1070, %v1222
        %v1231 = vld [vmem:[#allocation2] sm:$0x1]
        %v1232 = vadd.f32 %v1223, %v1224
        %v1233 = vadd.f32 %v1232, %v1225
        %v1234 = vadd.f32 %v1233, %v1226
        %v1235 = vadd.f32 %v1234, %v1227
        %v1236 = vadd.f32 %v1235, %v1228
        %v1237 = vadd.f32 %v1236, %v1229
        %v1238 = vadd.f32 %v1237, %v1230
        %v1239 = vrot.slane %v1238, 4
        %v1240 = vadd.f32 %v1238, %v1239
        %v1241 = vrot.slane %v1240, 2
        %v1242 = vadd.f32 %v1240, %v1241
        %v1243 = vrot.slane %v1242, 1
        %v1244 = vadd.f32 %v1242, %v1243
        %v1245 = vadd.f32 %v1231, %v1244
        %1246 = vst [vmem:[#allocation2] sm:$0x1] %v1245
        // Predicated region
        $region73: #{custom_efficientnet_forward.1} parent=67 // pred_check
          %p1247 = pneg %p440
        $region74: #{custom_efficientnet_forward.1} parent=67 // pred_check_branch
          %1249 = sbr.rel (%p1247) target = $region76
        $region75: #{custom_efficientnet_forward.1} parent=67 // pred_region
          %v1250 = vld [vmem:[#allocation2] sm:$0x1]
          %v1251 = vmul.f32 %v1250, 0.015625
          %v1252 = vpack.c.bf16 %v1251, %v1251
          %v1253 = vld [vmem:[%s10] sm:$0xf]
          %v1254 = vld [vmem:[%s10 + $0x4] sm:$0xf]
          %v1255 = vld [vmem:[%s10 + $0x8] sm:$0xf]
          %v1256 = vld [vmem:[%s10 + $0xc] sm:$0xf]
          %v1257 = vld [vmem:[%s10 + $0x10] sm:$0xf]
          %v1258 = vld [vmem:[%s10 + $0x14] sm:$0xf]
          %v1259 = vld [vmem:[%s10 + $0x18] sm:$0xf]
          %v1260 = vld [vmem:[%s10 + $0x1c] sm:$0xf]
          %v1261 = vld [vmem:[%s10 + $0x20] sm:$0xf]
          %v1262 = vld [vmem:[%s10 + $0x24] sm:$0xf]
          %v1263 = vld [vmem:[%s10 + $0x28] sm:$0xf]
          %v1264 = vld [vmem:[%s10 + $0x2c] sm:$0xf]
          %v1265 = vld [vmem:[%s10 + $0x30] sm:$0xf]
          %v1266 = vld [vmem:[%s10 + $0x34] sm:$0xf]
          %v1267 = vld [vmem:[%s10 + $0x38] sm:$0xf]
          %v1268 = vld [vmem:[%s10 + $0x3c] sm:$0xf]
          %v1269 = vld [vmem:[%s11] sm:$0x1]
          %v1286 = vunpack.c.l.b16 %v1253
          %v1287 = vunpack.c.l.b16 %v1254
          %v1288 = vunpack.c.l.b16 %v1255
          %v1289 = vunpack.c.l.b16 %v1256
          %v1290 = vunpack.c.l.b16 %v1257
          %v1291 = vunpack.c.l.b16 %v1258
          %v1292 = vunpack.c.l.b16 %v1259
          %v1293 = vunpack.c.l.b16 %v1260
          %v1294 = vunpack.c.l.b16 %v1261
          %v1295 = vunpack.c.l.b16 %v1262
          %v1296 = vunpack.c.l.b16 %v1263
          %v1297 = vunpack.c.l.b16 %v1264
          %v1298 = vunpack.c.l.b16 %v1265
          %v1299 = vunpack.c.l.b16 %v1266
          %v1300 = vunpack.c.l.b16 %v1267
          %v1301 = vunpack.c.l.b16 %v1268
          %v1302 = vpack.c.b16 %v1287, %v1286
          %v1303 = vpack.c.b16 %v1289, %v1288
          %v1304 = vpack.c.b16 %v1291, %v1290
          %v1305 = vpack.c.b16 %v1293, %v1292
          %v1306 = vpack.c.b16 %v1295, %v1294
          %v1307 = vpack.c.b16 %v1297, %v1296
          %v1308 = vpack.c.b16 %v1299, %v1298
          %v1309 = vpack.c.b16 %v1301, %v1300
          %1318 = vmatpush.bf16.msra.mxu0 %v1309
          %1319 = vmatpush.bf16.msra.mxu0 %v1308
          %1320 = vmatpush.bf16.msra.mxu0 %v1307
          %1321 = vmatpush.bf16.msra.mxu0 %v1306
          %1322 = vmatpush.bf16.msra.mxu0 %v1305
          %1323 = vmatpush.bf16.msra.mxu0 %v1304
          %1324 = vmatpush.bf16.msra.mxu0 %v1303
          %1325 = vmatpush.bf16.msra.mxu0 %v1302
          %1326 = vmatmul.bf16.gmra.mxu0 %v1252
          %v1327 = vpop.f32.mrf.mxu0
          %v1328 = vadd.f32 %v1269, %v1327
          %v1329 = vpop.f32.mrf.mxu0
          %1330 = vdwg.mxu0
          %vm1331 = vcmask 73728
          %1332 = vst.msk [vmem:[%s428] sm:$0x1] %vm1331, %v1328
        $region76: #{custom_efficientnet_forward.1} parent=67 // pred_fallthru
          _
        %s1333 = sand.u32 %s305, 1
        %s1334 = scalar_lea.sflag [#allocation4], %s1333
        %s1335 = sand.u32 %s305, 1
        %s1336 = scalar_lea.vmem [#allocation3], %s1335
        // Predicated region
        $region77: #{custom_efficientnet_forward.1} parent=67 // pred_check
          %p1337 = pneg %p315
        $region78: #{custom_efficientnet_forward.1} parent=67 // pred_check_branch
          %1339 = sbr.rel (%p1337) target = $region80
        $region79: #{custom_efficientnet_forward.1} parent=67 // pred_region
          %1341 = vsyncadd %s1334, 0
          %s1342 = scalar_lea.hbm %s12, %s30
          %s1344 = sshll.u32 %s1336, 4
          %s1345 = int_to_ptr.vmem [resolvable:$true] %s1344
          %s1346 = sshll.u32 %s1342, 4
          %s1347 = int_to_ptr.hbm [resolvable:$true] %s1346
          %1349 = dma.vmem_to_hbm [thread:$0]  %s1345, 16, %s1347, %s1334
        $region80: #{custom_efficientnet_forward.1} parent=67 // pred_fallthru
          _
      $region68: #{custom_efficientnet_forward.1} parent=5 // pred_fallthru
        _
      %p1350 = scmp.le.s32.totalorder 2, %s21
      // Predicated region
      $region81: #{custom_efficientnet_forward.1} parent=5 // pred_check
        %p1351 = pneg %p1350
      $region82: #{custom_efficientnet_forward.1} parent=5 // pred_check_branch
        %1353 = sbr.rel (%p1351) target = $region84
      $region83: #{custom_efficientnet_forward.1} parent=5 // pred_region
        %s1354 = ssub.s32 %s21, 2
        // Predicated region
        $region85: #{custom_efficientnet_forward.1} parent=83 // pred_check
          %p1355 = pneg %p321
        $region86: #{custom_efficientnet_forward.1} parent=83 // pred_check_branch
          %1357 = sbr.rel (%p1355) target = $region88
        $region87: #{custom_efficientnet_forward.1} parent=83 // pred_region
          %s1358 = sand.u32 %s306, 1
          %s1359 = scalar_lea.sflag [#allocation4], %s1358
          %s1360 = sand.u32 %s306, 1
          %s1361 = scalar_lea.vmem [#allocation3], %s1360
          %1363 = dma.done %s1359, 16
        $region88: #{custom_efficientnet_forward.1} parent=83 // pred_fallthru
          _
      $region84: #{custom_efficientnet_forward.1} parent=5 // pred_fallthru
        _
    $region6: #{custom_efficientnet_forward.1} parent=1 // loop_footer
      %s25 = sadd.s32 1, %s21
    $region7: #{custom_efficientnet_forward.1} parent=1 // loop_footer_branch
      %20 = sbr.rel target = $region3
    $region8: #{custom_efficientnet_forward.1} parent=1 // loop_exit
      _
    %1364 = vsyncpa [#allocation4], 1
    %s1365 = scalar_lea.sflag [#allocation4], 1
    %1366 = vsyncpa %s1365, 1

</llo_original>
